<compile_context>
chip_gen: v5e
topology: v5e:2x2
jax: 0.10.0
libtpu: 0.0.40
codegen_flags: <defaults>
</compile_context>

<pallas_src>
import numpy as np
import jax
import jax.numpy as jnp
from jax import lax
from jax.experimental import pallas as pl
from jax.experimental.pallas import tpu as pltpu


def _round_up(v, m):
    return (v + m - 1) // m * m


# Fits v7x's 64 MiB physical VMEM and raises the 16/32 MiB scoped defaults on
# v5e/v6e for large configs; a limit, not an allocation, so harmless when tiny.
VMEM_LIMIT_BYTES = 48 * 1024 * 1024


# ----------------------------------------------------------------------------
# Kernel 1: LSTM recurrence (stand-in for cell.dynamic_rnn)
#   grid = (B_pad // b_block ["parallel"], T_pad // t_chunk ["arbitrary"])
#   per step:  gates = x_proj[t] + h @ W_hh   (x_proj precomputed outside)
# ----------------------------------------------------------------------------
def _fast_sigmoid(x):
    # sigmoid(x) == 0.5 * (tanh(x/2) + 1): a single EUP push instead of
    # exp + reciprocal — fewer transcendentals on the serial critical path.
    return 0.5 * (jnp.tanh(0.5 * x) + 1.0)


def make_lstm_kernel(H, H_pad, b_block, t_chunk, unroll):
    def lstm_kernel(xp_ref, whh_ref, out_ref, h_scr, c_scr):
        @pl.when(pl.program_id(1) == 0)
        def _():
            h_scr[...] = jnp.zeros_like(h_scr)
            c_scr[...] = jnp.zeros_like(c_scr)

        # Hoisted zero pad block (JAX does not CSE broadcasts inside the loop).
        pad_cols = (jnp.zeros((b_block, H_pad - H), jnp.float32)
                    if H_pad > H else None)

        def step(tl, carry):
            h, c = carry                                   # f32 vreg-resident state
            xp = xp_ref[tl].astype(jnp.float32)            # (b_block, G) bf16->f32
            gates = xp + jnp.dot(h.astype(jnp.bfloat16), whh_ref[...],
                                 preferred_element_type=jnp.float32)
            # Tight gate packing: contiguous [i|f|g|o] columns of width H.
            i = _fast_sigmoid(gates[:, 0 * H:1 * H])
            f = _fast_sigmoid(gates[:, 1 * H:2 * H])
            g = jnp.tanh(gates[:, 2 * H:3 * H])
            o = _fast_sigmoid(gates[:, 3 * H:4 * H])
            c_new = f * c + i * g                          # (b_block, H)
            h_new = o * jnp.tanh(c_new)                    # (b_block, H)
            # Zero-pad hidden to H_pad lanes: keeps the hs store lane-dense and
            # the recurrent matmul LHS at a fixed 128-lane layout.
            h_full = (jnp.concatenate([h_new, pad_cols], axis=1)
                      if pad_cols is not None else h_new)
            out_ref[tl] = h_full.astype(out_ref.dtype)     # leading-dim store
            return (h_full, c_new)

        h_last, c_last = lax.fori_loop(0, t_chunk, step,
                                       (h_scr[...], c_scr[...]),
                                       unroll=unroll)
        h_scr[...] = h_last
        c_scr[...] = c_last

    return lstm_kernel


def lstm_forward(x_proj_tm_bf16, w_hh_bf16, H, t_chunk, b_block):
    """x_proj_tm: (T_pad, B_pad, G) bf16 -> hs (T_pad, B_pad, H_pad) f32."""
    T_pad, B_pad, G = x_proj_tm_bf16.shape
    H_pad = w_hh_bf16.shape[0]
    num_t = T_pad // t_chunk
    num_b = B_pad // b_block
    unroll = max(1, min(t_chunk, 8))        # always give the loop unroll
    return pl.pallas_call(
        make_lstm_kernel(H, H_pad, b_block, t_chunk, unroll),
        out_shape=jax.ShapeDtypeStruct((T_pad, B_pad, H_pad), jnp.float32),
        grid_spec=pltpu.PrefetchScalarGridSpec(
            num_scalar_prefetch=0,
            grid=(num_b, num_t),
            in_specs=[
                pl.BlockSpec((t_chunk, b_block, G), lambda b, t: (t, b, 0)),
                # Loop-invariant weight block: constant index_map => fetched once.
                pl.BlockSpec((H_pad, G), lambda b, t: (0, 0)),
            ],
            out_specs=pl.BlockSpec((t_chunk, b_block, H_pad),
                                   lambda b, t: (t, b, 0)),
            scratch_shapes=[
                pltpu.VMEM((b_block, H_pad), jnp.float32),   # h state
                pltpu.VMEM((b_block, H), jnp.float32),       # c state
            ],
        ),
        compiler_params=pltpu.CompilerParams(
            dimension_semantics=("parallel", "arbitrary"),
            vmem_limit_bytes=VMEM_LIMIT_BYTES),
    )(x_proj_tm_bf16, w_hh_bf16)


# ----------------------------------------------------------------------------
# Kernel 2: gmm_dense + parse_parameters + NLL -> per-chunk partial sums.
#   Transposed (U_pad, Rc) layout: every elementwise/EUP op is lane-dense,
#   K-mixture reductions run over sublanes.
#   grid = (num_row_chunks,)  "parallel" — no cross-iteration accumulation.
# ----------------------------------------------------------------------------
def _newton_recip(x):
    # EUP approximate reciprocal seed + one Newton step (~f32 accuracy).
    r = pl.reciprocal(x, approx=True)
    return r * (2.0 - x * r)


def make_gmm_nll_kernel(K, eps=1e-8, sigma_eps=1e-4):
    def gmm_nll_kernel(h_ref, w_ref, b_ref, y_ref, mask_ref, out_ref):
        h = h_ref[...].astype(jnp.bfloat16)                    # (Rc, H_pad)
        # z^T = W_gmm^T @ h^T  via the A @ B^T contraction: (U_pad, Rc)
        z_t = lax.dot_general(w_ref[...], h, (((1,), (1,)), ((), ())),
                              preferred_element_type=jnp.float32)
        z_t = z_t + b_ref[...]                                 # (U_pad,1) lane bcast

        # torch.split(z, [K, 2K, K, 2K, 1]) along the (now sublane) U axis.
        pis_l = z_t[0 * K:1 * K, :]                            # (K, Rc)
        sig1_l = z_t[1 * K:2 * K, :]
        sig2_l = z_t[2 * K:3 * K, :]
        rhos_l = z_t[3 * K:4 * K, :]
        mu_1 = z_t[4 * K:5 * K, :]
        mu_2 = z_t[5 * K:6 * K, :]
        es_l = z_t[6 * K:6 * K + 1, :]                         # (1, Rc)

        # parse_parameters (softmax over the K sublanes, manual form).
        m = jnp.max(pis_l, axis=0, keepdims=True)
        e = jnp.exp(pis_l - m)
        pis = e * _newton_recip(jnp.sum(e, axis=0, keepdims=True))
        sigma_1 = jnp.maximum(jnp.exp(sig1_l), sigma_eps)
        sigma_2 = jnp.maximum(jnp.exp(sig2_l), sigma_eps)
        rhos = jnp.clip(jnp.tanh(rhos_l), eps - 1.0, 1.0 - eps)
        es = jnp.clip(jax.nn.sigmoid(es_l), eps, 1.0 - eps)

        y_1 = y_ref[0:1, :]                                    # (1, Rc)
        y_2 = y_ref[1:2, :]
        y_3 = y_ref[2:3, :]

        # NLL — EUP-friendly forms, d1/d2 reused.
        inv_s1 = _newton_recip(sigma_1)
        inv_s2 = _newton_recip(sigma_2)
        one_m_rho2 = 1.0 - rhos * rhos
        inv_1mr2 = _newton_recip(one_m_rho2)
        d1 = (y_1 - mu_1) * inv_s1
        d2 = (y_2 - mu_2) * inv_s2
        Z = d1 * d1 + d2 * d2 - 2.0 * rhos * d1 * d2
        norm = (np.float32(1.0 / (2.0 * np.pi)) * inv_s1 * inv_s2
                * lax.rsqrt(one_m_rho2))
        gauss = jnp.exp(-0.5 * Z * inv_1mr2) * norm            # (K, Rc)
        gmm = jnp.maximum(jnp.sum(pis * gauss, axis=0, keepdims=True), eps)
        bern = jnp.where(y_3 == 1.0, es, 1.0 - es)             # (1, Rc)
        nll = -(jnp.log(gmm) + jnp.log(bern))                  # (1, Rc)

        valid = (mask_ref[...] > 0.0) & jnp.logical_not(jnp.isnan(nll))
        nll = jnp.where(valid, nll, jnp.zeros_like(nll))

        nll_sum = jnp.sum(nll)
        cnt = jnp.sum(valid.astype(jnp.float32))
        # Single merged lane-dense (8,128) partial block: nll in lane 0, cnt in
        # lane 1 (halves the tiny per-chunk output DMAs vs two splat outputs).
        lane = lax.broadcasted_iota(jnp.int32, out_ref.shape, 1)
        out_ref[...] = jnp.where(lane == 0, nll_sum,
                                 jnp.where(lane == 1, cnt, 0.0))

    return gmm_nll_kernel


def gmm_nll_partials(h_rows, y_t, mask_t, w_gmm_t_bf16, b_gmm_col, K, row_chunk):
    R_pad, H_pad = h_rows.shape
    U_pad = w_gmm_t_bf16.shape[0]
    num_chunks = R_pad // row_chunk
    return pl.pallas_call(
        make_gmm_nll_kernel(K),
        out_shape=jax.ShapeDtypeStruct((num_chunks, 8, 128), jnp.float32),
        grid_spec=pltpu.PrefetchScalarGridSpec(
            num_scalar_prefetch=0,
            grid=(num_chunks,),
            in_specs=[
                pl.BlockSpec((row_chunk, H_pad), lambda c: (c, 0)),
                pl.BlockSpec((U_pad, H_pad), lambda c: (0, 0)),   # loop-invariant
                pl.BlockSpec((U_pad, 1), lambda c: (0, 0)),       # loop-invariant
                pl.BlockSpec((3, row_chunk), lambda c: (0, c)),
                pl.BlockSpec((1, row_chunk), lambda c: (0, c)),
            ],
            out_specs=pl.BlockSpec((None, 8, 128), lambda c: (c, 0, 0)),
        ),
        compiler_params=pltpu.CompilerParams(
            dimension_semantics=("parallel",),
            vmem_limit_bytes=VMEM_LIMIT_BYTES),
    )(h_rows, w_gmm_t_bf16, b_gmm_col, y_t, mask_t)


# ----------------------------------------------------------------------------
# Full forward (padding / repacking glue in JAX, compute in Pallas)
# ----------------------------------------------------------------------------
def rnn_model_forward(x, y, x_len, params, K, t_chunk=None, row_chunk=512):
    B, T, D = x.shape
    H = params["w_hh"].shape[0]
    U = 6 * K + 1
    f32 = jnp.float32

    B_pad = _round_up(B, 8)
    H_pad = _round_up(H, 128)
    G = _round_up(4 * H, 128)            # tight contiguous gate packing
    U_pad = _round_up(U, 128)
    if t_chunk is None:
        t_chunk = min(T, 128)
    T_pad = _round_up(T, t_chunk)
    # Split the batch over a leading "parallel" grid axis when it is big enough
    # (lets v7x use both TensorCores; harmless elsewhere).
    num_b_blocks = 2 if (B_pad % 16 == 0) else 1
    b_block = B_pad // num_b_blocks

    # --- weights: tight gate packing, zero padding everywhere else (padded h
    #     lanes stay exactly 0 through the recurrence and contribute nothing) ---
    w_ih_p = jnp.zeros((D, G), f32).at[:, :4 * H].set(params["w_ih"].astype(f32))
    w_hh_p = jnp.zeros((H_pad, G), f32).at[:H, :4 * H].set(params["w_hh"].astype(f32))
    b_lstm_p = jnp.zeros((1, G), f32).at[:, :4 * H].set(params["b_lstm"].astype(f32))
    # GMM head pre-transposed to (U_pad, H_pad) for the lane-dense z^T layout.
    w_gmm_t = jnp.zeros((U_pad, H_pad), f32).at[:U, :H].set(
        params["w_gmm"].T.astype(f32))
    b_gmm_c = jnp.zeros((U_pad, 1), f32).at[:U, 0].set(params["b_gmm"][0].astype(f32))

    # --- pad activations (padded rows/steps are masked out of the loss) ---
    x_p = jnp.zeros((B_pad, T_pad, D), f32).at[:B, :T].set(x)
    y_p = jnp.zeros((B_pad, T_pad, 3), f32).at[:B, :T].set(y)
    lens_p = jnp.zeros((B_pad,), jnp.int32).at[:B].set(x_len.astype(jnp.int32))

    # --- hoisted input projection: one big parallel matmul, stored bf16 to halve
    #     the dominant HBM stream feeding the serial recurrence ---
    x_tm = jnp.transpose(x_p, (1, 0, 2))                   # (T_pad, B_pad, D), tiny
    x_proj = (x_tm.reshape(T_pad * B_pad, D) @ w_ih_p + b_lstm_p)
    x_proj = x_proj.reshape(T_pad, B_pad, G).astype(jnp.bfloat16)

    # --- serial recurrence (Pallas) ---
    hs = lstm_forward(x_proj, w_hh_p.astype(jnp.bfloat16), H, t_chunk, b_block)
    # hs: (T_pad, B_pad, H_pad) f32 time-major; row-flatten is a free reshape.
    R = T_pad * B_pad
    rc = row_chunk if R >= row_chunk else _round_up(R, 8)
    R_pad = _round_up(R, rc)

    h_rows = hs.reshape(R, H_pad)
    y_t = jnp.transpose(jnp.transpose(y_p, (1, 0, 2)).reshape(R, 3))   # (3, R)
    mask_t = (jnp.arange(T_pad, dtype=jnp.int32)[:, None]
              < lens_p[None, :]).astype(f32).reshape(1, R)             # (1, R)
    if R_pad > R:
        h_rows = jnp.pad(h_rows, ((0, R_pad - R), (0, 0)))
        y_t = jnp.pad(y_t, ((0, 0), (0, R_pad - R)))
        mask_t = jnp.pad(mask_t, ((0, 0), (0, R_pad - R)))

    # --- GMM head + NLL partial sums (Pallas), final tiny reduce in JAX ---
    parts = gmm_nll_partials(h_rows, y_t, mask_t,
                             w_gmm_t.astype(jnp.bfloat16), b_gmm_c, K, rc)
    total_nll = jnp.sum(parts[:, 0, 0])
    total_cnt = jnp.sum(parts[:, 0, 1])
    return total_nll / jnp.maximum(total_cnt, 1.0)


# ----------------------------------------------------------------------------
# Pure-JAX reference (numerical sanity check)
# ----------------------------------------------------------------------------
def reference_forward(x, y, x_len, params, K, eps=1e-8, sigma_eps=1e-4):
    B, T, D = x.shape
    H = params["w_hh"].shape[0]

    def step(carry, x_t):
        h, c = carry
        gates = x_t @ params["w_ih"] + h @ params["w_hh"] + params["b_lstm"][0]
        i, f, g, o = jnp.split(gates, 4, axis=-1)
        i, f, o = jax.nn.sigmoid(i), jax.nn.sigmoid(f), jax.nn.sigmoid(o)
        g = jnp.tanh(g)
        c = f * c + i * g
        h = o * jnp.tanh(c)
        return (h, c), h

    (_, _), hs = lax.scan(step, (jnp.zeros((B, H)), jnp.zeros((B, H))),
                          jnp.transpose(x, (1, 0, 2)))
    outputs = jnp.transpose(hs, (1, 0, 2))                     # (B, T, H)

    z = outputs @ params["w_gmm"] + params["b_gmm"][0]         # (B, T, U)
    pis_l, sigmas_l, rhos_l, mus, es_l = jnp.split(
        z, [K, 3 * K, 4 * K, 6 * K], axis=-1)
    pis = jax.nn.softmax(pis_l, axis=-1)
    sigmas = jnp.maximum(jnp.exp(sigmas_l), sigma_eps)
    rhos = jnp.clip(jnp.tanh(rhos_l), eps - 1.0, 1.0 - eps)
    es = jnp.clip(jax.nn.sigmoid(es_l), eps, 1.0 - eps)

    sigma_1, sigma_2 = sigmas[..., :K], sigmas[..., K:]
    mu_1, mu_2 = mus[..., :K], mus[..., K:]
    y_1, y_2, y_3 = y[..., 0:1], y[..., 1:2], y[..., 2:3]

    norm = 1.0 / (2 * np.pi * sigma_1 * sigma_2 * jnp.sqrt(1 - rhos ** 2))
    Z = (((y_1 - mu_1) / sigma_1) ** 2 + ((y_2 - mu_2) / sigma_2) ** 2
         - 2 * rhos * (y_1 - mu_1) * (y_2 - mu_2) / (sigma_1 * sigma_2))
    gauss = jnp.exp(-Z / (2 * (1 - rhos ** 2))) * norm
    gmm = jnp.maximum(jnp.sum(pis * gauss, axis=2), eps)
    bern = jnp.where(y_3[..., 0] == 1.0, es[..., 0], 1 - es[..., 0])
    nll = -(jnp.log(gmm) + jnp.log(bern))                      # (B, T)

    mask = jnp.arange(T)[None, :] < x_len[:, None]
    mask = mask & ~jnp.isnan(nll)
    nll = jnp.where(mask, nll, 0.0)
    num_valid = mask.astype(jnp.float32).sum(axis=1)
    return jnp.sum(nll) / jnp.maximum(jnp.sum(num_valid), 1.0)


# ----------------------------------------------------------------------------
if __name__ == "__main__":
    # Model hyper-params (mirrors RNNModel.__init__)
    LSTM_SIZE = 32                    # lstm_size
    K = 4                             # output_mixture_components
    ATTN_K = 2                        # attention_mixture_components (unused; see TODO)
    OUTPUT_UNITS = 6 * K + 1          # 25
    B, T, D = 2, 8, 3                 # batch, seq len, stroke features (dx, dy, pen)

    key = jax.random.PRNGKey(0)
    ks = jax.random.split(key, 8)
    scale = 0.1

    params = {
        "w_ih": (jax.random.normal(ks[0], (D, 4 * LSTM_SIZE)) * scale
                 ).astype(jnp.float32),
        "w_hh": (jax.random.normal(ks[1], (LSTM_SIZE, 4 * LSTM_SIZE)) * scale
                 ).astype(jnp.float32),
        "b_lstm": (jax.random.normal(ks[2], (1, 4 * LSTM_SIZE)) * scale
                   ).astype(jnp.float32),
        "w_gmm": (jax.random.normal(ks[3], (LSTM_SIZE, OUTPUT_UNITS)) * scale
                  ).astype(jnp.float32),
        "b_gmm": (jax.random.normal(ks[4], (1, OUTPUT_UNITS)) * scale
                  ).astype(jnp.float32),
    }

    # Strokes: (dx, dy) ~ N(0,1), pen-lift in {0,1}
    x_xy = jax.random.normal(ks[5], (B, T, 2), dtype=jnp.float32)
    x_pen = jax.random.bernoulli(ks[6], 0.2, (B, T, 1)).astype(jnp.float32)
    x = jnp.concatenate([x_xy, x_pen], axis=-1)

    y_xy = jax.random.normal(ks[7], (B, T, 2), dtype=jnp.float32)
    y_pen = jax.random.bernoulli(jax.random.fold_in(key, 99), 0.3,
                                 (B, T, 1)).astype(jnp.float32)
    y = jnp.concatenate([y_xy, y_pen], axis=-1)

    x_len = jnp.array([T, T - 2], dtype=jnp.int32)

    fwd = jax.jit(rnn_model_forward, static_argnames=("K", "t_chunk", "row_chunk"))
    loss = jax.block_until_ready(fwd(x, y, x_len, params, K=K))

    ref = jax.block_until_ready(reference_forward(x, y, x_len, params, K))
    assert np.isfinite(float(loss))
    tol = 2e-2 * max(1.0, abs(float(ref)))   # bf16 matmul operands -> small drift
    assert abs(float(loss) - float(ref)) < tol, (float(loss), float(ref))

    print("KERNEL_OK")
</pallas_src>

<mosaic_0001>
module attributes {stable_mosaic.version = 11 : i64} {
  func.func @gmm_nll_kernel(%arg0: i32, %arg1: memref<64x128xf32, #tpu.memory_space<vmem>>, %arg2: memref<128x128xbf16, #tpu.memory_space<vmem>>, %arg3: memref<128x1xf32, #tpu.memory_space<vmem>>, %arg4: memref<3x64xf32, #tpu.memory_space<vmem>>, %arg5: memref<1x64xf32, #tpu.memory_space<vmem>>, %arg6: memref<1x8x128xf32, #tpu.memory_space<vmem>>) attributes {dimension_semantics = [#tpu.dimension_semantics<parallel>], iteration_bounds = array<i64: 1>, scalar_prefetch = 0 : i64, scratch_operands = 0 : i64, tpu.core_type = #tpu.core_type<tc>, window_params = [{transform_indices = @transform_0, window_bounds = array<i64: 64, 128>}, {pipeline_mode = #tpu.pipeline_mode<synchronous>, transform_indices = @transform_1, window_bounds = array<i64: 128, 128>}, {pipeline_mode = #tpu.pipeline_mode<synchronous>, transform_indices = @transform_2, window_bounds = array<i64: 128, 1>}, {transform_indices = @transform_3, window_bounds = array<i64: 3, 64>}, {transform_indices = @transform_4, window_bounds = array<i64: 1, 64>}, {transform_indices = @transform_5, window_bounds = array<i64: 1, 8, 128>}]} {
    %c0 = arith.constant 0 : index
    %c0_0 = arith.constant 0 : index
    %0 = vector.load %arg1[%c0, %c0_0] : memref<64x128xf32, #tpu.memory_space<vmem>>, vector<64x128xf32>
    %1 = arith.truncf %0 : vector<64x128xf32> to vector<64x128xbf16>
    %c0_1 = arith.constant 0 : index
    %c0_2 = arith.constant 0 : index
    %2 = vector.load %arg2[%c0_1, %c0_2] : memref<128x128xbf16, #tpu.memory_space<vmem>>, vector<128x128xbf16>
    %cst = arith.constant dense<0.000000e+00> : vector<128x64xf32>
    %3 = tpu.matmul %2, %1, %cst {dimension_numbers = #tpu.dot_dimension_numbers<[1], [1], [0], [0], [0, 0, 1, 0], [], []>} : vector<128x128xbf16>, vector<64x128xbf16>, vector<128x64xf32> -> vector<128x64xf32>
    %c0_3 = arith.constant 0 : index
    %c0_4 = arith.constant 0 : index
    %4 = vector.load %arg3[%c0_3, %c0_4] : memref<128x1xf32, #tpu.memory_space<vmem>>, vector<128x1xf32>
    %5 = vector.broadcast %4 : vector<128x1xf32> to vector<128x64xf32>
    %6 = arith.addf %3, %5 : vector<128x64xf32>
    %7 = vector.extract_strided_slice %6 {offsets = [0, 0], sizes = [4, 64], strides = [1, 1]} : vector<128x64xf32> to vector<4x64xf32>
    %8 = vector.extract_strided_slice %6 {offsets = [4, 0], sizes = [4, 64], strides = [1, 1]} : vector<128x64xf32> to vector<4x64xf32>
    %9 = vector.extract_strided_slice %6 {offsets = [8, 0], sizes = [4, 64], strides = [1, 1]} : vector<128x64xf32> to vector<4x64xf32>
    %10 = vector.extract_strided_slice %6 {offsets = [12, 0], sizes = [4, 64], strides = [1, 1]} : vector<128x64xf32> to vector<4x64xf32>
    %11 = vector.extract_strided_slice %6 {offsets = [16, 0], sizes = [4, 64], strides = [1, 1]} : vector<128x64xf32> to vector<4x64xf32>
    %12 = vector.extract_strided_slice %6 {offsets = [20, 0], sizes = [4, 64], strides = [1, 1]} : vector<128x64xf32> to vector<4x64xf32>
    %13 = vector.extract_strided_slice %6 {offsets = [24, 0], sizes = [1, 64], strides = [1, 1]} : vector<128x64xf32> to vector<1x64xf32>
    %cst_5 = arith.constant dense<0xFF800000> : vector<64xf32>
    %14 = vector.multi_reduction <maximumf>, %7, %cst_5 [0] : vector<4x64xf32> to vector<64xf32>
    %15 = vector.shape_cast %14 : vector<64xf32> to vector<1x64xf32>
    %16 = vector.broadcast %15 : vector<1x64xf32> to vector<4x64xf32>
    %17 = arith.subf %7, %16 : vector<4x64xf32>
    %18 = math.exp %17 : vector<4x64xf32>
    %cst_6 = arith.constant dense<0.000000e+00> : vector<64xf32>
    %19 = vector.multi_reduction <add>, %18, %cst_6 [0] : vector<4x64xf32> to vector<64xf32>
    %20 = vector.shape_cast %19 : vector<64xf32> to vector<1x64xf32>
    %21 = tpu.reciprocal %20 {approx = true} : vector<1x64xf32> -> vector<1x64xf32>
    %22 = arith.mulf %20, %21 : vector<1x64xf32>
    %cst_7 = arith.constant 2.000000e+00 : f32
    %23 = vector.broadcast %cst_7 : f32 to vector<1x64xf32>
    %24 = arith.subf %23, %22 : vector<1x64xf32>
    %25 = arith.mulf %21, %24 : vector<1x64xf32>
    %26 = vector.broadcast %25 : vector<1x64xf32> to vector<4x64xf32>
    %27 = arith.mulf %18, %26 : vector<4x64xf32>
    %28 = math.exp %8 : vector<4x64xf32>
    %cst_8 = arith.constant 9.99999974E-5 : f32
    %29 = vector.broadcast %cst_8 : f32 to vector<4x64xf32>
    %30 = arith.maximumf %28, %29 : vector<4x64xf32>
    %31 = math.exp %9 : vector<4x64xf32>
    %cst_9 = arith.constant 9.99999974E-5 : f32
    %32 = vector.broadcast %cst_9 : f32 to vector<4x64xf32>
    %33 = arith.maximumf %31, %32 : vector<4x64xf32>
    %34 = math.tanh %10 : vector<4x64xf32>
    %cst_10 = arith.constant -1.000000e+00 : f32
    %cst_11 = arith.constant 1.000000e+00 : f32
    %35 = vector.broadcast %cst_10 : f32 to vector<4x64xf32>
    %36 = arith.maximumf %35, %34 : vector<4x64xf32>
    %37 = vector.broadcast %cst_11 : f32 to vector<4x64xf32>
    %38 = arith.minimumf %37, %36 : vector<4x64xf32>
    %39 = arith.negf %13 : vector<1x64xf32>
    %40 = math.exp %39 : vector<1x64xf32>
    %cst_12 = arith.constant 1.000000e+00 : f32
    %41 = vector.broadcast %cst_12 : f32 to vector<1x64xf32>
    %42 = arith.addf %41, %40 : vector<1x64xf32>
    %43 = arith.divf %41, %42 : vector<1x64xf32>
    %cst_13 = arith.constant 9.99999993E-9 : f32
    %cst_14 = arith.constant 1.000000e+00 : f32
    %44 = vector.broadcast %cst_13 : f32 to vector<1x64xf32>
    %45 = arith.maximumf %44, %43 : vector<1x64xf32>
    %46 = vector.broadcast %cst_14 : f32 to vector<1x64xf32>
    %47 = arith.minimumf %46, %45 : vector<1x64xf32>
    %c0_15 = arith.constant 0 : index
    %c0_16 = arith.constant 0 : index
    %48 = vector.load %arg4[%c0_15, %c0_16] : memref<3x64xf32, #tpu.memory_space<vmem>>, vector<1x64xf32>
    %c1 = arith.constant 1 : index
    %c0_17 = arith.constant 0 : index
    %49 = vector.load %arg4[%c1, %c0_17] : memref<3x64xf32, #tpu.memory_space<vmem>>, vector<1x64xf32>
    %c2 = arith.constant 2 : index
    %c0_18 = arith.constant 0 : index
    %50 = vector.load %arg4[%c2, %c0_18] : memref<3x64xf32, #tpu.memory_space<vmem>>, vector<1x64xf32>
    %51 = tpu.reciprocal %30 {approx = true} : vector<4x64xf32> -> vector<4x64xf32>
    %52 = arith.mulf %30, %51 : vector<4x64xf32>
    %cst_19 = arith.constant 2.000000e+00 : f32
    %53 = vector.broadcast %cst_19 : f32 to vector<4x64xf32>
    %54 = arith.subf %53, %52 : vector<4x64xf32>
    %55 = arith.mulf %51, %54 : vector<4x64xf32>
    %56 = tpu.reciprocal %33 {approx = true} : vector<4x64xf32> -> vector<4x64xf32>
    %57 = arith.mulf %33, %56 : vector<4x64xf32>
    %cst_20 = arith.constant 2.000000e+00 : f32
    %58 = vector.broadcast %cst_20 : f32 to vector<4x64xf32>
    %59 = arith.subf %58, %57 : vector<4x64xf32>
    %60 = arith.mulf %56, %59 : vector<4x64xf32>
    %61 = arith.mulf %38, %38 : vector<4x64xf32>
    %cst_21 = arith.constant 1.000000e+00 : f32
    %62 = vector.broadcast %cst_21 : f32 to vector<4x64xf32>
    %63 = arith.subf %62, %61 : vector<4x64xf32>
    %64 = tpu.reciprocal %63 {approx = true} : vector<4x64xf32> -> vector<4x64xf32>
    %65 = arith.mulf %63, %64 : vector<4x64xf32>
    %cst_22 = arith.constant 2.000000e+00 : f32
    %66 = vector.broadcast %cst_22 : f32 to vector<4x64xf32>
    %67 = arith.subf %66, %65 : vector<4x64xf32>
    %68 = arith.mulf %64, %67 : vector<4x64xf32>
    %69 = vector.broadcast %48 : vector<1x64xf32> to vector<4x64xf32>
    %70 = arith.subf %69, %11 : vector<4x64xf32>
    %71 = arith.mulf %70, %55 : vector<4x64xf32>
    %72 = vector.broadcast %49 : vector<1x64xf32> to vector<4x64xf32>
    %73 = arith.subf %72, %12 : vector<4x64xf32>
    %74 = arith.mulf %73, %60 : vector<4x64xf32>
    %75 = arith.mulf %71, %71 : vector<4x64xf32>
    %76 = arith.mulf %74, %74 : vector<4x64xf32>
    %77 = arith.addf %75, %76 : vector<4x64xf32>
    %cst_23 = arith.constant 2.000000e+00 : f32
    %78 = vector.broadcast %cst_23 : f32 to vector<4x64xf32>
    %79 = arith.mulf %78, %38 : vector<4x64xf32>
    %80 = arith.mulf %79, %71 : vector<4x64xf32>
    %81 = arith.mulf %80, %74 : vector<4x64xf32>
    %82 = arith.subf %77, %81 : vector<4x64xf32>
    %cst_24 = arith.constant 0.159154937 : f32
    %83 = vector.broadcast %cst_24 : f32 to vector<4x64xf32>
    %84 = arith.mulf %83, %55 : vector<4x64xf32>
    %85 = arith.mulf %84, %60 : vector<4x64xf32>
    %86 = math.rsqrt %63 : vector<4x64xf32>
    %87 = arith.mulf %85, %86 : vector<4x64xf32>
    %cst_25 = arith.constant -5.000000e-01 : f32
    %88 = vector.broadcast %cst_25 : f32 to vector<4x64xf32>
    %89 = arith.mulf %88, %82 : vector<4x64xf32>
    %90 = arith.mulf %89, %68 : vector<4x64xf32>
    %91 = math.exp %90 : vector<4x64xf32>
    %92 = arith.mulf %91, %87 : vector<4x64xf32>
    %93 = arith.mulf %27, %92 : vector<4x64xf32>
    %cst_26 = arith.constant dense<0.000000e+00> : vector<64xf32>
    %94 = vector.multi_reduction <add>, %93, %cst_26 [0] : vector<4x64xf32> to vector<64xf32>
    %95 = vector.shape_cast %94 : vector<64xf32> to vector<1x64xf32>
    %cst_27 = arith.constant 9.99999993E-9 : f32
    %96 = vector.broadcast %cst_27 : f32 to vector<1x64xf32>
    %97 = arith.maximumf %95, %96 : vector<1x64xf32>
    %cst_28 = arith.constant 1.000000e+00 : f32
    %98 = vector.broadcast %cst_28 : f32 to vector<1x64xf32>
    %99 = arith.cmpf oeq, %50, %98 : vector<1x64xf32>
    %cst_29 = arith.constant 1.000000e+00 : f32
    %100 = vector.broadcast %cst_29 : f32 to vector<1x64xf32>
    %101 = arith.subf %100, %47 : vector<1x64xf32>
    %102 = arith.select %99, %47, %101 : vector<1x64xi1>, vector<1x64xf32>
    %103 = math.log %97 : vector<1x64xf32>
    %104 = math.log %102 : vector<1x64xf32>
    %105 = arith.addf %103, %104 : vector<1x64xf32>
    %cst_30 = arith.constant 0.000000e+00 : f32
    %106 = vector.broadcast %cst_30 : f32 to vector<1x64xf32>
    %107 = arith.subf %106, %105 : vector<1x64xf32>
    %c0_31 = arith.constant 0 : index
    %c0_32 = arith.constant 0 : index
    %108 = vector.load %arg5[%c0_31, %c0_32] : memref<1x64xf32, #tpu.memory_space<vmem>>, vector<1x64xf32>
    %cst_33 = arith.constant 0.000000e+00 : f32
    %109 = vector.broadcast %cst_33 : f32 to vector<1x64xf32>
    %110 = arith.cmpf ogt, %108, %109 : vector<1x64xf32>
    %111 = arith.cmpf one, %107, %107 : vector<1x64xf32>
    %cst_34 = arith.constant dense<true> : vector<1x64xi1>
    %112 = arith.xori %111, %cst_34 : vector<1x64xi1>
    %113 = arith.andi %110, %112 : vector<1x64xi1>
    %cst_35 = arith.constant 0.000000e+00 : f32
    %114 = vector.broadcast %cst_35 : f32 to vector<1x64xf32>
    %115 = arith.select %113, %107, %114 : vector<1x64xi1>, vector<1x64xf32>
    %116 = vector.shape_cast %115 : vector<1x64xf32> to vector<1x1x64xf32>
    %cst_36 = arith.constant dense<0.000000e+00> : vector<1xf32>
    %117 = vector.multi_reduction <add>, %116, %cst_36 [1, 2] : vector<1x1x64xf32> to vector<1xf32>
    %118 = vector.shape_cast %117 : vector<1xf32> to vector<1x1x1xf32>
    %119 = vector.extract %118[0, 0, 0] : f32 from vector<1x1x1xf32>
    %120 = arith.extui %113 : vector<1x64xi1> to vector<1x64xi32>
    %121 = arith.sitofp %120 : vector<1x64xi32> to vector<1x64xf32>
    %122 = vector.shape_cast %121 : vector<1x64xf32> to vector<1x1x64xf32>
    %cst_37 = arith.constant dense<0.000000e+00> : vector<1xf32>
    %123 = vector.multi_reduction <add>, %122, %cst_37 [1, 2] : vector<1x1x64xf32> to vector<1xf32>
    %124 = vector.shape_cast %123 : vector<1xf32> to vector<1x1x1xf32>
    %125 = vector.extract %124[0, 0, 0] : f32 from vector<1x1x1xf32>
    %126 = tpu.iota {dimensions = array<i32: 1>} : vector<8x128xi32>
    %c0_i32 = arith.constant 0 : i32
    %127 = vector.broadcast %c0_i32 : i32 to vector<8x128xi32>
    %128 = arith.cmpi eq, %126, %127 : vector<8x128xi32>
    %c1_i32 = arith.constant 1 : i32
    %129 = vector.broadcast %c1_i32 : i32 to vector<8x128xi32>
    %130 = arith.cmpi eq, %126, %129 : vector<8x128xi32>
    %cst_38 = arith.constant 0.000000e+00 : f32
    %131 = vector.broadcast %125 : f32 to vector<8x128xf32>
    %132 = vector.broadcast %cst_38 : f32 to vector<8x128xf32>
    %133 = arith.select %130, %131, %132 : vector<8x128xi1>, vector<8x128xf32>
    %134 = vector.broadcast %119 : f32 to vector<8x128xf32>
    %135 = arith.select %128, %134, %133 : vector<8x128xi1>, vector<8x128xf32>
    %c0_39 = arith.constant 0 : index
    %c0_40 = arith.constant 0 : index
    %c0_41 = arith.constant 0 : index
    %136 = vector.load %arg6[%c0_39, %c0_40, %c0_41] : memref<1x8x128xf32, #tpu.memory_space<vmem>>, vector<1x8x128xf32>
    %137 = vector.shape_cast %136 : vector<1x8x128xf32> to vector<8x128xf32>
    %138 = vector.shape_cast %135 : vector<8x128xf32> to vector<1x8x128xf32>
    tpu.vector_store %arg6[%c0_39, %c0_40, %c0_41], %138 {strides = array<i32>} : memref<1x8x128xf32, #tpu.memory_space<vmem>>, vector<1x8x128xf32>,
    return
  }
  func.func @transform_0(%arg0: i32) -> (i32, i32) {
    %c0_i32 = arith.constant 0 : i32
    %c0_i32_0 = arith.constant 0 : i32
    return %arg0, %c0_i32 : i32, i32
  }
  func.func @transform_1(%arg0: i32) -> (i32, i32) {
    %c0_i32 = arith.constant 0 : i32
    %c0_i32_0 = arith.constant 0 : i32
    %c0_i32_1 = arith.constant 0 : i32
    return %c0_i32, %c0_i32_0 : i32, i32
  }
  func.func @transform_2(%arg0: i32) -> (i32, i32) {
    %c0_i32 = arith.constant 0 : i32
    %c0_i32_0 = arith.constant 0 : i32
    %c0_i32_1 = arith.constant 0 : i32
    return %c0_i32, %c0_i32_0 : i32, i32
  }
  func.func @transform_3(%arg0: i32) -> (i32, i32) {
    %c0_i32 = arith.constant 0 : i32
    %c0_i32_0 = arith.constant 0 : i32
    return %c0_i32, %arg0 : i32, i32
  }
  func.func @transform_4(%arg0: i32) -> (i32, i32) {
    %c0_i32 = arith.constant 0 : i32
    %c0_i32_0 = arith.constant 0 : i32
    return %c0_i32, %arg0 : i32, i32
  }
  func.func @transform_5(%arg0: i32) -> (i32, i32, i32) {
    %c0_i32 = arith.constant 0 : i32
    %c0_i32_0 = arith.constant 0 : i32
    %c0_i32_1 = arith.constant 0 : i32
    return %arg0, %c0_i32, %c0_i32_0 : i32, i32, i32
  }
}

module attributes {stable_mosaic.version = 11 : i64} {
  func.func @lstm_kernel(%arg0: i32, %arg1: i32, %arg2: memref<8x8x128xbf16, #tpu.memory_space<vmem>>, %arg3: memref<128x128xbf16, #tpu.memory_space<vmem>>, %arg4: memref<8x8x128xf32, #tpu.memory_space<vmem>>, %arg5: memref<8x128xf32, #tpu.memory_space<vmem>>, %arg6: memref<8x32xf32, #tpu.memory_space<vmem>>) attributes {dimension_semantics = [#tpu.dimension_semantics<parallel>, #tpu.dimension_semantics<arbitrary>], iteration_bounds = array<i64: 1, 1>, scalar_prefetch = 0 : i64, scratch_operands = 2 : i64, tpu.core_type = #tpu.core_type<tc>, window_params = [{transform_indices = @transform_0, window_bounds = array<i64: 8, 8, 128>}, {pipeline_mode = #tpu.pipeline_mode<synchronous>, transform_indices = @transform_1, window_bounds = array<i64: 128, 128>}, {transform_indices = @transform_2, window_bounds = array<i64: 8, 8, 128>}]} {
    %c0_i32 = arith.constant 0 : i32
    %0 = arith.cmpi eq, %arg1, %c0_i32 : i32
    %1 = arith.extui %0 : i1 to i32
    %c0_i32_0 = arith.constant 0 : i32
    %2 = arith.cmpi ne, %1, %c0_i32_0 : i32
    scf.if %2 {
      %cst_137 = arith.constant 0.000000e+00 : f32
      %360 = vector.broadcast %cst_137 : f32 to vector<8x128xf32>
      %c0_138 = arith.constant 0 : index
      %c0_139 = arith.constant 0 : index
      %361 = vector.load %arg5[%c0_138, %c0_139] : memref<8x128xf32, #tpu.memory_space<vmem>>, vector<8x128xf32>
      tpu.vector_store %arg5[%c0_138, %c0_139], %360 {strides = array<i32>} : memref<8x128xf32, #tpu.memory_space<vmem>>, vector<8x128xf32>,
      %cst_140 = arith.constant 0.000000e+00 : f32
      %362 = vector.broadcast %cst_140 : f32 to vector<8x32xf32>
      %c0_141 = arith.constant 0 : index
      %c0_142 = arith.constant 0 : index
      %363 = vector.load %arg6[%c0_141, %c0_142] : memref<8x32xf32, #tpu.memory_space<vmem>>, vector<8x32xf32>
      tpu.vector_store %arg6[%c0_141, %c0_142], %362 {strides = array<i32>} : memref<8x32xf32, #tpu.memory_space<vmem>>, vector<8x32xf32>,
    } else {
    }
    %cst = arith.constant 0.000000e+00 : f32
    %3 = vector.broadcast %cst : f32 to vector<8x96xf32>
    %c0 = arith.constant 0 : index
    %c0_1 = arith.constant 0 : index
    %4 = vector.load %arg5[%c0, %c0_1] : memref<8x128xf32, #tpu.memory_space<vmem>>, vector<8x128xf32>
    %c0_2 = arith.constant 0 : index
    %c0_3 = arith.constant 0 : index
    %5 = vector.load %arg6[%c0_2, %c0_3] : memref<8x32xf32, #tpu.memory_space<vmem>>, vector<8x32xf32>
    %c0_i32_4 = arith.constant 0 : i32
    %6 = arith.index_cast %c0_i32_4 : i32 to index
    %c0_5 = arith.constant 0 : index
    %c0_6 = arith.constant 0 : index
    %7 = vector.load %arg2[%6, %c0_5, %c0_6] : memref<8x8x128xbf16, #tpu.memory_space<vmem>>, vector<1x8x128xbf16>
    %8 = vector.shape_cast %7 : vector<1x8x128xbf16> to vector<8x128xbf16>
    %9 = arith.extf %8 : vector<8x128xbf16> to vector<8x128xf32>
    %10 = arith.truncf %4 : vector<8x128xf32> to vector<8x128xbf16>
    %c0_7 = arith.constant 0 : index
    %c0_8 = arith.constant 0 : index
    %11 = vector.load %arg3[%c0_7, %c0_8] : memref<128x128xbf16, #tpu.memory_space<vmem>>, vector<128x128xbf16>
    %cst_9 = arith.constant dense<0.000000e+00> : vector<8x128xf32>
    %12 = tpu.matmul %10, %11, %cst_9 {dimension_numbers = #tpu.dot_dimension_numbers<[1], [0], [0], [1], [0, 0, 1, 1], [], []>} : vector<8x128xbf16>, vector<128x128xbf16>, vector<8x128xf32> -> vector<8x128xf32>
    %13 = arith.addf %9, %12 : vector<8x128xf32>
    %14 = vector.extract_strided_slice %13 {offsets = [0, 0], sizes = [8, 32], strides = [1, 1]} : vector<8x128xf32> to vector<8x32xf32>
    %cst_10 = arith.constant 5.000000e-01 : f32
    %15 = vector.broadcast %cst_10 : f32 to vector<8x32xf32>
    %16 = arith.mulf %15, %14 : vector<8x32xf32>
    %17 = math.tanh %16 : vector<8x32xf32>
    %cst_11 = arith.constant 1.000000e+00 : f32
    %18 = vector.broadcast %cst_11 : f32 to vector<8x32xf32>
    %19 = arith.addf %17, %18 : vector<8x32xf32>
    %cst_12 = arith.constant 5.000000e-01 : f32
    %20 = vector.broadcast %cst_12 : f32 to vector<8x32xf32>
    %21 = arith.mulf %20, %19 : vector<8x32xf32>
    %22 = vector.extract_strided_slice %13 {offsets = [0, 32], sizes = [8, 32], strides = [1, 1]} : vector<8x128xf32> to vector<8x32xf32>
    %cst_13 = arith.constant 5.000000e-01 : f32
    %23 = vector.broadcast %cst_13 : f32 to vector<8x32xf32>
    %24 = arith.mulf %23, %22 : vector<8x32xf32>
    %25 = math.tanh %24 : vector<8x32xf32>
    %cst_14 = arith.constant 1.000000e+00 : f32
    %26 = vector.broadcast %cst_14 : f32 to vector<8x32xf32>
    %27 = arith.addf %25, %26 : vector<8x32xf32>
    %cst_15 = arith.constant 5.000000e-01 : f32
    %28 = vector.broadcast %cst_15 : f32 to vector<8x32xf32>
    %29 = arith.mulf %28, %27 : vector<8x32xf32>
    %30 = vector.extract_strided_slice %13 {offsets = [0, 64], sizes = [8, 32], strides = [1, 1]} : vector<8x128xf32> to vector<8x32xf32>
    %31 = math.tanh %30 : vector<8x32xf32>
    %32 = vector.extract_strided_slice %13 {offsets = [0, 96], sizes = [8, 32], strides = [1, 1]} : vector<8x128xf32> to vector<8x32xf32>
    %cst_16 = arith.constant 5.000000e-01 : f32
    %33 = vector.broadcast %cst_16 : f32 to vector<8x32xf32>
    %34 = arith.mulf %33, %32 : vector<8x32xf32>
    %35 = math.tanh %34 : vector<8x32xf32>
    %cst_17 = arith.constant 1.000000e+00 : f32
    %36 = vector.broadcast %cst_17 : f32 to vector<8x32xf32>
    %37 = arith.addf %35, %36 : vector<8x32xf32>
    %cst_18 = arith.constant 5.000000e-01 : f32
    %38 = vector.broadcast %cst_18 : f32 to vector<8x32xf32>
    %39 = arith.mulf %38, %37 : vector<8x32xf32>
    %40 = arith.mulf %29, %5 : vector<8x32xf32>
    %41 = arith.mulf %21, %31 : vector<8x32xf32>
    %42 = arith.addf %40, %41 : vector<8x32xf32>
    %43 = math.tanh %42 : vector<8x32xf32>
    %44 = arith.mulf %39, %43 : vector<8x32xf32>
    %45 = tpu.concatenate %44, %3 in 1 : vector<8x32xf32>, vector<8x96xf32> -> vector<8x128xf32>
    %46 = arith.index_cast %c0_i32_4 : i32 to index
    %c0_19 = arith.constant 0 : index
    %c0_20 = arith.constant 0 : index
    %47 = vector.load %arg4[%46, %c0_19, %c0_20] : memref<8x8x128xf32, #tpu.memory_space<vmem>>, vector<1x8x128xf32>
    %48 = vector.shape_cast %47 : vector<1x8x128xf32> to vector<8x128xf32>
    %49 = vector.shape_cast %45 : vector<8x128xf32> to vector<1x8x128xf32>
    tpu.vector_store %arg4[%46, %c0_19, %c0_20], %49 {strides = array<i32>} : memref<8x8x128xf32, #tpu.memory_space<vmem>>, vector<1x8x128xf32>,
    %c1_i32 = arith.constant 1 : i32
    %50 = arith.index_cast %c1_i32 : i32 to index
    %c0_21 = arith.constant 0 : index
    %c0_22 = arith.constant 0 : index
    %51 = vector.load %arg2[%50, %c0_21, %c0_22] : memref<8x8x128xbf16, #tpu.memory_space<vmem>>, vector<1x8x128xbf16>
    %52 = vector.shape_cast %51 : vector<1x8x128xbf16> to vector<8x128xbf16>
    %53 = arith.extf %52 : vector<8x128xbf16> to vector<8x128xf32>
    %54 = arith.truncf %45 : vector<8x128xf32> to vector<8x128xbf16>
    %c0_23 = arith.constant 0 : index
    %c0_24 = arith.constant 0 : index
    %55 = vector.load %arg3[%c0_23, %c0_24] : memref<128x128xbf16, #tpu.memory_space<vmem>>, vector<128x128xbf16>
    %cst_25 = arith.constant dense<0.000000e+00> : vector<8x128xf32>
    %56 = tpu.matmul %54, %55, %cst_25 {dimension_numbers = #tpu.dot_dimension_numbers<[1], [0], [0], [1], [0, 0, 1, 1], [], []>} : vector<8x128xbf16>, vector<128x128xbf16>, vector<8x128xf32> -> vector<8x128xf32>
    %57 = arith.addf %53, %56 : vector<8x128xf32>
    %58 = vector.extract_strided_slice %57 {offsets = [0, 0], sizes = [8, 32], strides = [1, 1]} : vector<8x128xf32> to vector<8x32xf32>
    %cst_26 = arith.constant 5.000000e-01 : f32
    %59 = vector.broadcast %cst_26 : f32 to vector<8x32xf32>
    %60 = arith.mulf %59, %58 : vector<8x32xf32>
    %61 = math.tanh %60 : vector<8x32xf32>
    %cst_27 = arith.constant 1.000000e+00 : f32
    %62 = vector.broadcast %cst_27 : f32 to vector<8x32xf32>
    %63 = arith.addf %61, %62 : vector<8x32xf32>
    %cst_28 = arith.constant 5.000000e-01 : f32
    %64 = vector.broadcast %cst_28 : f32 to vector<8x32xf32>
    %65 = arith.mulf %64, %63 : vector<8x32xf32>
    %66 = vector.extract_strided_slice %57 {offsets = [0, 32], sizes = [8, 32], strides = [1, 1]} : vector<8x128xf32> to vector<8x32xf32>
    %cst_29 = arith.constant 5.000000e-01 : f32
    %67 = vector.broadcast %cst_29 : f32 to vector<8x32xf32>
    %68 = arith.mulf %67, %66 : vector<8x32xf32>
    %69 = math.tanh %68 : vector<8x32xf32>
    %cst_30 = arith.constant 1.000000e+00 : f32
    %70 = vector.broadcast %cst_30 : f32 to vector<8x32xf32>
    %71 = arith.addf %69, %70 : vector<8x32xf32>
    %cst_31 = arith.constant 5.000000e-01 : f32
    %72 = vector.broadcast %cst_31 : f32 to vector<8x32xf32>
    %73 = arith.mulf %72, %71 : vector<8x32xf32>
    %74 = vector.extract_strided_slice %57 {offsets = [0, 64], sizes = [8, 32], strides = [1, 1]} : vector<8x128xf32> to vector<8x32xf32>
    %75 = math.tanh %74 : vector<8x32xf32>
    %76 = vector.extract_strided_slice %57 {offsets = [0, 96], sizes = [8, 32], strides = [1, 1]} : vector<8x128xf32> to vector<8x32xf32>
    %cst_32 = arith.constant 5.000000e-01 : f32
    %77 = vector.broadcast %cst_32 : f32 to vector<8x32xf32>
    %78 = arith.mulf %77, %76 : vector<8x32xf32>
    %79 = math.tanh %78 : vector<8x32xf32>
    %cst_33 = arith.constant 1.000000e+00 : f32
    %80 = vector.broadcast %cst_33 : f32 to vector<8x32xf32>
    %81 = arith.addf %79, %80 : vector<8x32xf32>
    %cst_34 = arith.constant 5.000000e-01 : f32
    %82 = vector.broadcast %cst_34 : f32 to vector<8x32xf32>
    %83 = arith.mulf %82, %81 : vector<8x32xf32>
    %84 = arith.mulf %73, %42 : vector<8x32xf32>
    %85 = arith.mulf %65, %75 : vector<8x32xf32>
    %86 = arith.addf %84, %85 : vector<8x32xf32>
    %87 = math.tanh %86 : vector<8x32xf32>
    %88 = arith.mulf %83, %87 : vector<8x32xf32>
    %89 = tpu.concatenate %88, %3 in 1 : vector<8x32xf32>, vector<8x96xf32> -> vector<8x128xf32>
    %90 = arith.index_cast %c1_i32 : i32 to index
    %c0_35 = arith.constant 0 : index
    %c0_36 = arith.constant 0 : index
    %91 = vector.load %arg4[%90, %c0_35, %c0_36] : memref<8x8x128xf32, #tpu.memory_space<vmem>>, vector<1x8x128xf32>
    %92 = vector.shape_cast %91 : vector<1x8x128xf32> to vector<8x128xf32>
    %93 = vector.shape_cast %89 : vector<8x128xf32> to vector<1x8x128xf32>
    tpu.vector_store %arg4[%90, %c0_35, %c0_36], %93 {strides = array<i32>} : memref<8x8x128xf32, #tpu.memory_space<vmem>>, vector<1x8x128xf32>,
    %c2_i32 = arith.constant 2 : i32
    %94 = arith.index_cast %c2_i32 : i32 to index
    %c0_37 = arith.constant 0 : index
    %c0_38 = arith.constant 0 : index
    %95 = vector.load %arg2[%94, %c0_37, %c0_38] : memref<8x8x128xbf16, #tpu.memory_space<vmem>>, vector<1x8x128xbf16>
    %96 = vector.shape_cast %95 : vector<1x8x128xbf16> to vector<8x128xbf16>
    %97 = arith.extf %96 : vector<8x128xbf16> to vector<8x128xf32>
    %98 = arith.truncf %89 : vector<8x128xf32> to vector<8x128xbf16>
    %c0_39 = arith.constant 0 : index
    %c0_40 = arith.constant 0 : index
    %99 = vector.load %arg3[%c0_39, %c0_40] : memref<128x128xbf16, #tpu.memory_space<vmem>>, vector<128x128xbf16>
    %cst_41 = arith.constant dense<0.000000e+00> : vector<8x128xf32>
    %100 = tpu.matmul %98, %99, %cst_41 {dimension_numbers = #tpu.dot_dimension_numbers<[1], [0], [0], [1], [0, 0, 1, 1], [], []>} : vector<8x128xbf16>, vector<128x128xbf16>, vector<8x128xf32> -> vector<8x128xf32>
    %101 = arith.addf %97, %100 : vector<8x128xf32>
    %102 = vector.extract_strided_slice %101 {offsets = [0, 0], sizes = [8, 32], strides = [1, 1]} : vector<8x128xf32> to vector<8x32xf32>
    %cst_42 = arith.constant 5.000000e-01 : f32
    %103 = vector.broadcast %cst_42 : f32 to vector<8x32xf32>
    %104 = arith.mulf %103, %102 : vector<8x32xf32>
    %105 = math.tanh %104 : vector<8x32xf32>
    %cst_43 = arith.constant 1.000000e+00 : f32
    %106 = vector.broadcast %cst_43 : f32 to vector<8x32xf32>
    %107 = arith.addf %105, %106 : vector<8x32xf32>
    %cst_44 = arith.constant 5.000000e-01 : f32
    %108 = vector.broadcast %cst_44 : f32 to vector<8x32xf32>
    %109 = arith.mulf %108, %107 : vector<8x32xf32>
    %110 = vector.extract_strided_slice %101 {offsets = [0, 32], sizes = [8, 32], strides = [1, 1]} : vector<8x128xf32> to vector<8x32xf32>
    %cst_45 = arith.constant 5.000000e-01 : f32
    %111 = vector.broadcast %cst_45 : f32 to vector<8x32xf32>
    %112 = arith.mulf %111, %110 : vector<8x32xf32>
    %113 = math.tanh %112 : vector<8x32xf32>
    %cst_46 = arith.constant 1.000000e+00 : f32
    %114 = vector.broadcast %cst_46 : f32 to vector<8x32xf32>
    %115 = arith.addf %113, %114 : vector<8x32xf32>
    %cst_47 = arith.constant 5.000000e-01 : f32
    %116 = vector.broadcast %cst_47 : f32 to vector<8x32xf32>
    %117 = arith.mulf %116, %115 : vector<8x32xf32>
    %118 = vector.extract_strided_slice %101 {offsets = [0, 64], sizes = [8, 32], strides = [1, 1]} : vector<8x128xf32> to vector<8x32xf32>
    %119 = math.tanh %118 : vector<8x32xf32>
    %120 = vector.extract_strided_slice %101 {offsets = [0, 96], sizes = [8, 32], strides = [1, 1]} : vector<8x128xf32> to vector<8x32xf32>
    %cst_48 = arith.constant 5.000000e-01 : f32
    %121 = vector.broadcast %cst_48 : f32 to vector<8x32xf32>
    %122 = arith.mulf %121, %120 : vector<8x32xf32>
    %123 = math.tanh %122 : vector<8x32xf32>
    %cst_49 = arith.constant 1.000000e+00 : f32
    %124 = vector.broadcast %cst_49 : f32 to vector<8x32xf32>
    %125 = arith.addf %123, %124 : vector<8x32xf32>
    %cst_50 = arith.constant 5.000000e-01 : f32
    %126 = vector.broadcast %cst_50 : f32 to vector<8x32xf32>
    %127 = arith.mulf %126, %125 : vector<8x32xf32>
    %128 = arith.mulf %117, %86 : vector<8x32xf32>
    %129 = arith.mulf %109, %119 : vector<8x32xf32>
    %130 = arith.addf %128, %129 : vector<8x32xf32>
    %131 = math.tanh %130 : vector<8x32xf32>
    %132 = arith.mulf %127, %131 : vector<8x32xf32>
    %133 = tpu.concatenate %132, %3 in 1 : vector<8x32xf32>, vector<8x96xf32> -> vector<8x128xf32>
    %134 = arith.index_cast %c2_i32 : i32 to index
    %c0_51 = arith.constant 0 : index
    %c0_52 = arith.constant 0 : index
    %135 = vector.load %arg4[%134, %c0_51, %c0_52] : memref<8x8x128xf32, #tpu.memory_space<vmem>>, vector<1x8x128xf32>
    %136 = vector.shape_cast %135 : vector<1x8x128xf32> to vector<8x128xf32>
    %137 = vector.shape_cast %133 : vector<8x128xf32> to vector<1x8x128xf32>
    tpu.vector_store %arg4[%134, %c0_51, %c0_52], %137 {strides = array<i32>} : memref<8x8x128xf32, #tpu.memory_space<vmem>>, vector<1x8x128xf32>,
    %c3_i32 = arith.constant 3 : i32
    %138 = arith.index_cast %c3_i32 : i32 to index
    %c0_53 = arith.constant 0 : index
    %c0_54 = arith.constant 0 : index
    %139 = vector.load %arg2[%138, %c0_53, %c0_54] : memref<8x8x128xbf16, #tpu.memory_space<vmem>>, vector<1x8x128xbf16>
    %140 = vector.shape_cast %139 : vector<1x8x128xbf16> to vector<8x128xbf16>
    %141 = arith.extf %140 : vector<8x128xbf16> to vector<8x128xf32>
    %142 = arith.truncf %133 : vector<8x128xf32> to vector<8x128xbf16>
    %c0_55 = arith.constant 0 : index
    %c0_56 = arith.constant 0 : index
    %143 = vector.load %arg3[%c0_55, %c0_56] : memref<128x128xbf16, #tpu.memory_space<vmem>>, vector<128x128xbf16>
    %cst_57 = arith.constant dense<0.000000e+00> : vector<8x128xf32>
    %144 = tpu.matmul %142, %143, %cst_57 {dimension_numbers = #tpu.dot_dimension_numbers<[1], [0], [0], [1], [0, 0, 1, 1], [], []>} : vector<8x128xbf16>, vector<128x128xbf16>, vector<8x128xf32> -> vector<8x128xf32>
    %145 = arith.addf %141, %144 : vector<8x128xf32>
    %146 = vector.extract_strided_slice %145 {offsets = [0, 0], sizes = [8, 32], strides = [1, 1]} : vector<8x128xf32> to vector<8x32xf32>
    %cst_58 = arith.constant 5.000000e-01 : f32
    %147 = vector.broadcast %cst_58 : f32 to vector<8x32xf32>
    %148 = arith.mulf %147, %146 : vector<8x32xf32>
    %149 = math.tanh %148 : vector<8x32xf32>
    %cst_59 = arith.constant 1.000000e+00 : f32
    %150 = vector.broadcast %cst_59 : f32 to vector<8x32xf32>
    %151 = arith.addf %149, %150 : vector<8x32xf32>
    %cst_60 = arith.constant 5.000000e-01 : f32
    %152 = vector.broadcast %cst_60 : f32 to vector<8x32xf32>
    %153 = arith.mulf %152, %151 : vector<8x32xf32>
    %154 = vector.extract_strided_slice %145 {offsets = [0, 32], sizes = [8, 32], strides = [1, 1]} : vector<8x128xf32> to vector<8x32xf32>
    %cst_61 = arith.constant 5.000000e-01 : f32
    %155 = vector.broadcast %cst_61 : f32 to vector<8x32xf32>
    %156 = arith.mulf %155, %154 : vector<8x32xf32>
    %157 = math.tanh %156 : vector<8x32xf32>
    %cst_62 = arith.constant 1.000000e+00 : f32
    %158 = vector.broadcast %cst_62 : f32 to vector<8x32xf32>
    %159 = arith.addf %157, %158 : vector<8x32xf32>
    %cst_63 = arith.constant 5.000000e-01 : f32
    %160 = vector.broadcast %cst_63 : f32 to vector<8x32xf32>
    %161 = arith.mulf %160, %159 : vector<8x32xf32>
    %162 = vector.extract_strided_slice %145 {offsets = [0, 64], sizes = [8, 32], strides = [1, 1]} : vector<8x128xf32> to vector<8x32xf32>
    %163 = math.tanh %162 : vector<8x32xf32>
    %164 = vector.extract_strided_slice %145 {offsets = [0, 96], sizes = [8, 32], strides = [1, 1]} : vector<8x128xf32> to vector<8x32xf32>
    %cst_64 = arith.constant 5.000000e-01 : f32
    %165 = vector.broadcast %cst_64 : f32 to vector<8x32xf32>
    %166 = arith.mulf %165, %164 : vector<8x32xf32>
    %167 = math.tanh %166 : vector<8x32xf32>
    %cst_65 = arith.constant 1.000000e+00 : f32
    %168 = vector.broadcast %cst_65 : f32 to vector<8x32xf32>
    %169 = arith.addf %167, %168 : vector<8x32xf32>
    %cst_66 = arith.constant 5.000000e-01 : f32
    %170 = vector.broadcast %cst_66 : f32 to vector<8x32xf32>
    %171 = arith.mulf %170, %169 : vector<8x32xf32>
    %172 = arith.mulf %161, %130 : vector<8x32xf32>
    %173 = arith.mulf %153, %163 : vector<8x32xf32>
    %174 = arith.addf %172, %173 : vector<8x32xf32>
    %175 = math.tanh %174 : vector<8x32xf32>
    %176 = arith.mulf %171, %175 : vector<8x32xf32>
    %177 = tpu.concatenate %176, %3 in 1 : vector<8x32xf32>, vector<8x96xf32> -> vector<8x128xf32>
    %178 = arith.index_cast %c3_i32 : i32 to index
    %c0_67 = arith.constant 0 : index
    %c0_68 = arith.constant 0 : index
    %179 = vector.load %arg4[%178, %c0_67, %c0_68] : memref<8x8x128xf32, #tpu.memory_space<vmem>>, vector<1x8x128xf32>
    %180 = vector.shape_cast %179 : vector<1x8x128xf32> to vector<8x128xf32>
    %181 = vector.shape_cast %177 : vector<8x128xf32> to vector<1x8x128xf32>
    tpu.vector_store %arg4[%178, %c0_67, %c0_68], %181 {strides = array<i32>} : memref<8x8x128xf32, #tpu.memory_space<vmem>>, vector<1x8x128xf32>,
    %c4_i32 = arith.constant 4 : i32
    %182 = arith.index_cast %c4_i32 : i32 to index
    %c0_69 = arith.constant 0 : index
    %c0_70 = arith.constant 0 : index
    %183 = vector.load %arg2[%182, %c0_69, %c0_70] : memref<8x8x128xbf16, #tpu.memory_space<vmem>>, vector<1x8x128xbf16>
    %184 = vector.shape_cast %183 : vector<1x8x128xbf16> to vector<8x128xbf16>
    %185 = arith.extf %184 : vector<8x128xbf16> to vector<8x128xf32>
    %186 = arith.truncf %177 : vector<8x128xf32> to vector<8x128xbf16>
    %c0_71 = arith.constant 0 : index
    %c0_72 = arith.constant 0 : index
    %187 = vector.load %arg3[%c0_71, %c0_72] : memref<128x128xbf16, #tpu.memory_space<vmem>>, vector<128x128xbf16>
    %cst_73 = arith.constant dense<0.000000e+00> : vector<8x128xf32>
    %188 = tpu.matmul %186, %187, %cst_73 {dimension_numbers = #tpu.dot_dimension_numbers<[1], [0], [0], [1], [0, 0, 1, 1], [], []>} : vector<8x128xbf16>, vector<128x128xbf16>, vector<8x128xf32> -> vector<8x128xf32>
    %189 = arith.addf %185, %188 : vector<8x128xf32>
    %190 = vector.extract_strided_slice %189 {offsets = [0, 0], sizes = [8, 32], strides = [1, 1]} : vector<8x128xf32> to vector<8x32xf32>
    %cst_74 = arith.constant 5.000000e-01 : f32
    %191 = vector.broadcast %cst_74 : f32 to vector<8x32xf32>
    %192 = arith.mulf %191, %190 : vector<8x32xf32>
    %193 = math.tanh %192 : vector<8x32xf32>
    %cst_75 = arith.constant 1.000000e+00 : f32
    %194 = vector.broadcast %cst_75 : f32 to vector<8x32xf32>
    %195 = arith.addf %193, %194 : vector<8x32xf32>
    %cst_76 = arith.constant 5.000000e-01 : f32
    %196 = vector.broadcast %cst_76 : f32 to vector<8x32xf32>
    %197 = arith.mulf %196, %195 : vector<8x32xf32>
    %198 = vector.extract_strided_slice %189 {offsets = [0, 32], sizes = [8, 32], strides = [1, 1]} : vector<8x128xf32> to vector<8x32xf32>
    %cst_77 = arith.constant 5.000000e-01 : f32
    %199 = vector.broadcast %cst_77 : f32 to vector<8x32xf32>
    %200 = arith.mulf %199, %198 : vector<8x32xf32>
    %201 = math.tanh %200 : vector<8x32xf32>
    %cst_78 = arith.constant 1.000000e+00 : f32
    %202 = vector.broadcast %cst_78 : f32 to vector<8x32xf32>
    %203 = arith.addf %201, %202 : vector<8x32xf32>
    %cst_79 = arith.constant 5.000000e-01 : f32
    %204 = vector.broadcast %cst_79 : f32 to vector<8x32xf32>
    %205 = arith.mulf %204, %203 : vector<8x32xf32>
    %206 = vector.extract_strided_slice %189 {offsets = [0, 64], sizes = [8, 32], strides = [1, 1]} : vector<8x128xf32> to vector<8x32xf32>
    %207 = math.tanh %206 : vector<8x32xf32>
    %208 = vector.extract_strided_slice %189 {offsets = [0, 96], sizes = [8, 32], strides = [1, 1]} : vector<8x128xf32> to vector<8x32xf32>
    %cst_80 = arith.constant 5.000000e-01 : f32
    %209 = vector.broadcast %cst_80 : f32 to vector<8x32xf32>
    %210 = arith.mulf %209, %208 : vector<8x32xf32>
    %211 = math.tanh %210 : vector<8x32xf32>
    %cst_81 = arith.constant 1.000000e+00 : f32
    %212 = vector.broadcast %cst_81 : f32 to vector<8x32xf32>
    %213 = arith.addf %211, %212 : vector<8x32xf32>
    %cst_82 = arith.constant 5.000000e-01 : f32
    %214 = vector.broadcast %cst_82 : f32 to vector<8x32xf32>
    %215 = arith.mulf %214, %213 : vector<8x32xf32>
    %216 = arith.mulf %205, %174 : vector<8x32xf32>
    %217 = arith.mulf %197, %207 : vector<8x32xf32>
    %218 = arith.addf %216, %217 : vector<8x32xf32>
    %219 = math.tanh %218 : vector<8x32xf32>
    %220 = arith.mulf %215, %219 : vector<8x32xf32>
    %221 = tpu.concatenate %220, %3 in 1 : vector<8x32xf32>, vector<8x96xf32> -> vector<8x128xf32>
    %222 = arith.index_cast %c4_i32 : i32 to index
    %c0_83 = arith.constant 0 : index
    %c0_84 = arith.constant 0 : index
    %223 = vector.load %arg4[%222, %c0_83, %c0_84] : memref<8x8x128xf32, #tpu.memory_space<vmem>>, vector<1x8x128xf32>
    %224 = vector.shape_cast %223 : vector<1x8x128xf32> to vector<8x128xf32>
    %225 = vector.shape_cast %221 : vector<8x128xf32> to vector<1x8x128xf32>
    tpu.vector_store %arg4[%222, %c0_83, %c0_84], %225 {strides = array<i32>} : memref<8x8x128xf32, #tpu.memory_space<vmem>>, vector<1x8x128xf32>,
    %c5_i32 = arith.constant 5 : i32
    %226 = arith.index_cast %c5_i32 : i32 to index
    %c0_85 = arith.constant 0 : index
    %c0_86 = arith.constant 0 : index
    %227 = vector.load %arg2[%226, %c0_85, %c0_86] : memref<8x8x128xbf16, #tpu.memory_space<vmem>>, vector<1x8x128xbf16>
    %228 = vector.shape_cast %227 : vector<1x8x128xbf16> to vector<8x128xbf16>
    %229 = arith.extf %228 : vector<8x128xbf16> to vector<8x128xf32>
    %230 = arith.truncf %221 : vector<8x128xf32> to vector<8x128xbf16>
    %c0_87 = arith.constant 0 : index
    %c0_88 = arith.constant 0 : index
    %231 = vector.load %arg3[%c0_87, %c0_88] : memref<128x128xbf16, #tpu.memory_space<vmem>>, vector<128x128xbf16>
    %cst_89 = arith.constant dense<0.000000e+00> : vector<8x128xf32>
    %232 = tpu.matmul %230, %231, %cst_89 {dimension_numbers = #tpu.dot_dimension_numbers<[1], [0], [0], [1], [0, 0, 1, 1], [], []>} : vector<8x128xbf16>, vector<128x128xbf16>, vector<8x128xf32> -> vector<8x128xf32>
    %233 = arith.addf %229, %232 : vector<8x128xf32>
    %234 = vector.extract_strided_slice %233 {offsets = [0, 0], sizes = [8, 32], strides = [1, 1]} : vector<8x128xf32> to vector<8x32xf32>
    %cst_90 = arith.constant 5.000000e-01 : f32
    %235 = vector.broadcast %cst_90 : f32 to vector<8x32xf32>
    %236 = arith.mulf %235, %234 : vector<8x32xf32>
    %237 = math.tanh %236 : vector<8x32xf32>
    %cst_91 = arith.constant 1.000000e+00 : f32
    %238 = vector.broadcast %cst_91 : f32 to vector<8x32xf32>
    %239 = arith.addf %237, %238 : vector<8x32xf32>
    %cst_92 = arith.constant 5.000000e-01 : f32
    %240 = vector.broadcast %cst_92 : f32 to vector<8x32xf32>
    %241 = arith.mulf %240, %239 : vector<8x32xf32>
    %242 = vector.extract_strided_slice %233 {offsets = [0, 32], sizes = [8, 32], strides = [1, 1]} : vector<8x128xf32> to vector<8x32xf32>
    %cst_93 = arith.constant 5.000000e-01 : f32
    %243 = vector.broadcast %cst_93 : f32 to vector<8x32xf32>
    %244 = arith.mulf %243, %242 : vector<8x32xf32>
    %245 = math.tanh %244 : vector<8x32xf32>
    %cst_94 = arith.constant 1.000000e+00 : f32
    %246 = vector.broadcast %cst_94 : f32 to vector<8x32xf32>
    %247 = arith.addf %245, %246 : vector<8x32xf32>
    %cst_95 = arith.constant 5.000000e-01 : f32
    %248 = vector.broadcast %cst_95 : f32 to vector<8x32xf32>
    %249 = arith.mulf %248, %247 : vector<8x32xf32>
    %250 = vector.extract_strided_slice %233 {offsets = [0, 64], sizes = [8, 32], strides = [1, 1]} : vector<8x128xf32> to vector<8x32xf32>
    %251 = math.tanh %250 : vector<8x32xf32>
    %252 = vector.extract_strided_slice %233 {offsets = [0, 96], sizes = [8, 32], strides = [1, 1]} : vector<8x128xf32> to vector<8x32xf32>
    %cst_96 = arith.constant 5.000000e-01 : f32
    %253 = vector.broadcast %cst_96 : f32 to vector<8x32xf32>
    %254 = arith.mulf %253, %252 : vector<8x32xf32>
    %255 = math.tanh %254 : vector<8x32xf32>
    %cst_97 = arith.constant 1.000000e+00 : f32
    %256 = vector.broadcast %cst_97 : f32 to vector<8x32xf32>
    %257 = arith.addf %255, %256 : vector<8x32xf32>
    %cst_98 = arith.constant 5.000000e-01 : f32
    %258 = vector.broadcast %cst_98 : f32 to vector<8x32xf32>
    %259 = arith.mulf %258, %257 : vector<8x32xf32>
    %260 = arith.mulf %249, %218 : vector<8x32xf32>
    %261 = arith.mulf %241, %251 : vector<8x32xf32>
    %262 = arith.addf %260, %261 : vector<8x32xf32>
    %263 = math.tanh %262 : vector<8x32xf32>
    %264 = arith.mulf %259, %263 : vector<8x32xf32>
    %265 = tpu.concatenate %264, %3 in 1 : vector<8x32xf32>, vector<8x96xf32> -> vector<8x128xf32>
    %266 = arith.index_cast %c5_i32 : i32 to index
    %c0_99 = arith.constant 0 : index
    %c0_100 = arith.constant 0 : index
    %267 = vector.load %arg4[%266, %c0_99, %c0_100] : memref<8x8x128xf32, #tpu.memory_space<vmem>>, vector<1x8x128xf32>
    %268 = vector.shape_cast %267 : vector<1x8x128xf32> to vector<8x128xf32>
    %269 = vector.shape_cast %265 : vector<8x128xf32> to vector<1x8x128xf32>
    tpu.vector_store %arg4[%266, %c0_99, %c0_100], %269 {strides = array<i32>} : memref<8x8x128xf32, #tpu.memory_space<vmem>>, vector<1x8x128xf32>,
    %c6_i32 = arith.constant 6 : i32
    %270 = arith.index_cast %c6_i32 : i32 to index
    %c0_101 = arith.constant 0 : index
    %c0_102 = arith.constant 0 : index
    %271 = vector.load %arg2[%270, %c0_101, %c0_102] : memref<8x8x128xbf16, #tpu.memory_space<vmem>>, vector<1x8x128xbf16>
    %272 = vector.shape_cast %271 : vector<1x8x128xbf16> to vector<8x128xbf16>
    %273 = arith.extf %272 : vector<8x128xbf16> to vector<8x128xf32>
    %274 = arith.truncf %265 : vector<8x128xf32> to vector<8x128xbf16>
    %c0_103 = arith.constant 0 : index
    %c0_104 = arith.constant 0 : index
    %275 = vector.load %arg3[%c0_103, %c0_104] : memref<128x128xbf16, #tpu.memory_space<vmem>>, vector<128x128xbf16>
    %cst_105 = arith.constant dense<0.000000e+00> : vector<8x128xf32>
    %276 = tpu.matmul %274, %275, %cst_105 {dimension_numbers = #tpu.dot_dimension_numbers<[1], [0], [0], [1], [0, 0, 1, 1], [], []>} : vector<8x128xbf16>, vector<128x128xbf16>, vector<8x128xf32> -> vector<8x128xf32>
    %277 = arith.addf %273, %276 : vector<8x128xf32>
    %278 = vector.extract_strided_slice %277 {offsets = [0, 0], sizes = [8, 32], strides = [1, 1]} : vector<8x128xf32> to vector<8x32xf32>
    %cst_106 = arith.constant 5.000000e-01 : f32
    %279 = vector.broadcast %cst_106 : f32 to vector<8x32xf32>
    %280 = arith.mulf %279, %278 : vector<8x32xf32>
    %281 = math.tanh %280 : vector<8x32xf32>
    %cst_107 = arith.constant 1.000000e+00 : f32
    %282 = vector.broadcast %cst_107 : f32 to vector<8x32xf32>
    %283 = arith.addf %281, %282 : vector<8x32xf32>
    %cst_108 = arith.constant 5.000000e-01 : f32
    %284 = vector.broadcast %cst_108 : f32 to vector<8x32xf32>
    %285 = arith.mulf %284, %283 : vector<8x32xf32>
    %286 = vector.extract_strided_slice %277 {offsets = [0, 32], sizes = [8, 32], strides = [1, 1]} : vector<8x128xf32> to vector<8x32xf32>
    %cst_109 = arith.constant 5.000000e-01 : f32
    %287 = vector.broadcast %cst_109 : f32 to vector<8x32xf32>
    %288 = arith.mulf %287, %286 : vector<8x32xf32>
    %289 = math.tanh %288 : vector<8x32xf32>
    %cst_110 = arith.constant 1.000000e+00 : f32
    %290 = vector.broadcast %cst_110 : f32 to vector<8x32xf32>
    %291 = arith.addf %289, %290 : vector<8x32xf32>
    %cst_111 = arith.constant 5.000000e-01 : f32
    %292 = vector.broadcast %cst_111 : f32 to vector<8x32xf32>
    %293 = arith.mulf %292, %291 : vector<8x32xf32>
    %294 = vector.extract_strided_slice %277 {offsets = [0, 64], sizes = [8, 32], strides = [1, 1]} : vector<8x128xf32> to vector<8x32xf32>
    %295 = math.tanh %294 : vector<8x32xf32>
    %296 = vector.extract_strided_slice %277 {offsets = [0, 96], sizes = [8, 32], strides = [1, 1]} : vector<8x128xf32> to vector<8x32xf32>
    %cst_112 = arith.constant 5.000000e-01 : f32
    %297 = vector.broadcast %cst_112 : f32 to vector<8x32xf32>
    %298 = arith.mulf %297, %296 : vector<8x32xf32>
    %299 = math.tanh %298 : vector<8x32xf32>
    %cst_113 = arith.constant 1.000000e+00 : f32
    %300 = vector.broadcast %cst_113 : f32 to vector<8x32xf32>
    %301 = arith.addf %299, %300 : vector<8x32xf32>
    %cst_114 = arith.constant 5.000000e-01 : f32
    %302 = vector.broadcast %cst_114 : f32 to vector<8x32xf32>
    %303 = arith.mulf %302, %301 : vector<8x32xf32>
    %304 = arith.mulf %293, %262 : vector<8x32xf32>
    %305 = arith.mulf %285, %295 : vector<8x32xf32>
    %306 = arith.addf %304, %305 : vector<8x32xf32>
    %307 = math.tanh %306 : vector<8x32xf32>
    %308 = arith.mulf %303, %307 : vector<8x32xf32>
    %309 = tpu.concatenate %308, %3 in 1 : vector<8x32xf32>, vector<8x96xf32> -> vector<8x128xf32>
    %310 = arith.index_cast %c6_i32 : i32 to index
    %c0_115 = arith.constant 0 : index
    %c0_116 = arith.constant 0 : index
    %311 = vector.load %arg4[%310, %c0_115, %c0_116] : memref<8x8x128xf32, #tpu.memory_space<vmem>>, vector<1x8x128xf32>
    %312 = vector.shape_cast %311 : vector<1x8x128xf32> to vector<8x128xf32>
    %313 = vector.shape_cast %309 : vector<8x128xf32> to vector<1x8x128xf32>
    tpu.vector_store %arg4[%310, %c0_115, %c0_116], %313 {strides = array<i32>} : memref<8x8x128xf32, #tpu.memory_space<vmem>>, vector<1x8x128xf32>,
    %c7_i32 = arith.constant 7 : i32
    %314 = arith.index_cast %c7_i32 : i32 to index
    %c0_117 = arith.constant 0 : index
    %c0_118 = arith.constant 0 : index
    %315 = vector.load %arg2[%314, %c0_117, %c0_118] : memref<8x8x128xbf16, #tpu.memory_space<vmem>>, vector<1x8x128xbf16>
    %316 = vector.shape_cast %315 : vector<1x8x128xbf16> to vector<8x128xbf16>
    %317 = arith.extf %316 : vector<8x128xbf16> to vector<8x128xf32>
    %318 = arith.truncf %309 : vector<8x128xf32> to vector<8x128xbf16>
    %c0_119 = arith.constant 0 : index
    %c0_120 = arith.constant 0 : index
    %319 = vector.load %arg3[%c0_119, %c0_120] : memref<128x128xbf16, #tpu.memory_space<vmem>>, vector<128x128xbf16>
    %cst_121 = arith.constant dense<0.000000e+00> : vector<8x128xf32>
    %320 = tpu.matmul %318, %319, %cst_121 {dimension_numbers = #tpu.dot_dimension_numbers<[1], [0], [0], [1], [0, 0, 1, 1], [], []>} : vector<8x128xbf16>, vector<128x128xbf16>, vector<8x128xf32> -> vector<8x128xf32>
    %321 = arith.addf %317, %320 : vector<8x128xf32>
    %322 = vector.extract_strided_slice %321 {offsets = [0, 0], sizes = [8, 32], strides = [1, 1]} : vector<8x128xf32> to vector<8x32xf32>
    %cst_122 = arith.constant 5.000000e-01 : f32
    %323 = vector.broadcast %cst_122 : f32 to vector<8x32xf32>
    %324 = arith.mulf %323, %322 : vector<8x32xf32>
    %325 = math.tanh %324 : vector<8x32xf32>
    %cst_123 = arith.constant 1.000000e+00 : f32
    %326 = vector.broadcast %cst_123 : f32 to vector<8x32xf32>
    %327 = arith.addf %325, %326 : vector<8x32xf32>
    %cst_124 = arith.constant 5.000000e-01 : f32
    %328 = vector.broadcast %cst_124 : f32 to vector<8x32xf32>
    %329 = arith.mulf %328, %327 : vector<8x32xf32>
    %330 = vector.extract_strided_slice %321 {offsets = [0, 32], sizes = [8, 32], strides = [1, 1]} : vector<8x128xf32> to vector<8x32xf32>
    %cst_125 = arith.constant 5.000000e-01 : f32
    %331 = vector.broadcast %cst_125 : f32 to vector<8x32xf32>
    %332 = arith.mulf %331, %330 : vector<8x32xf32>
    %333 = math.tanh %332 : vector<8x32xf32>
    %cst_126 = arith.constant 1.000000e+00 : f32
    %334 = vector.broadcast %cst_126 : f32 to vector<8x32xf32>
    %335 = arith.addf %333, %334 : vector<8x32xf32>
    %cst_127 = arith.constant 5.000000e-01 : f32
    %336 = vector.broadcast %cst_127 : f32 to vector<8x32xf32>
    %337 = arith.mulf %336, %335 : vector<8x32xf32>
    %338 = vector.extract_strided_slice %321 {offsets = [0, 64], sizes = [8, 32], strides = [1, 1]} : vector<8x128xf32> to vector<8x32xf32>
    %339 = math.tanh %338 : vector<8x32xf32>
    %340 = vector.extract_strided_slice %321 {offsets = [0, 96], sizes = [8, 32], strides = [1, 1]} : vector<8x128xf32> to vector<8x32xf32>
    %cst_128 = arith.constant 5.000000e-01 : f32
    %341 = vector.broadcast %cst_128 : f32 to vector<8x32xf32>
    %342 = arith.mulf %341, %340 : vector<8x32xf32>
    %343 = math.tanh %342 : vector<8x32xf32>
    %cst_129 = arith.constant 1.000000e+00 : f32
    %344 = vector.broadcast %cst_129 : f32 to vector<8x32xf32>
    %345 = arith.addf %343, %344 : vector<8x32xf32>
    %cst_130 = arith.constant 5.000000e-01 : f32
    %346 = vector.broadcast %cst_130 : f32 to vector<8x32xf32>
    %347 = arith.mulf %346, %345 : vector<8x32xf32>
    %348 = arith.mulf %337, %306 : vector<8x32xf32>
    %349 = arith.mulf %329, %339 : vector<8x32xf32>
    %350 = arith.addf %348, %349 : vector<8x32xf32>
    %351 = math.tanh %350 : vector<8x32xf32>
    %352 = arith.mulf %347, %351 : vector<8x32xf32>
    %353 = tpu.concatenate %352, %3 in 1 : vector<8x32xf32>, vector<8x96xf32> -> vector<8x128xf32>
    %354 = arith.index_cast %c7_i32 : i32 to index
    %c0_131 = arith.constant 0 : index
    %c0_132 = arith.constant 0 : index
    %355 = vector.load %arg4[%354, %c0_131, %c0_132] : memref<8x8x128xf32, #tpu.memory_space<vmem>>, vector<1x8x128xf32>
    %356 = vector.shape_cast %355 : vector<1x8x128xf32> to vector<8x128xf32>
    %357 = vector.shape_cast %353 : vector<8x128xf32> to vector<1x8x128xf32>
    tpu.vector_store %arg4[%354, %c0_131, %c0_132], %357 {strides = array<i32>} : memref<8x8x128xf32, #tpu.memory_space<vmem>>, vector<1x8x128xf32>,
    %c8_i32 = arith.constant 8 : i32
    %c0_133 = arith.constant 0 : index
    %c0_134 = arith.constant 0 : index
    %358 = vector.load %arg5[%c0_133, %c0_134] : memref<8x128xf32, #tpu.memory_space<vmem>>, vector<8x128xf32>
    tpu.vector_store %arg5[%c0_133, %c0_134], %353 {strides = array<i32>} : memref<8x128xf32, #tpu.memory_space<vmem>>, vector<8x128xf32>,
    %c0_135 = arith.constant 0 : index
    %c0_136 = arith.constant 0 : index
    %359 = vector.load %arg6[%c0_135, %c0_136] : memref<8x32xf32, #tpu.memory_space<vmem>>, vector<8x32xf32>
    tpu.vector_store %arg6[%c0_135, %c0_136], %350 {strides = array<i32>} : memref<8x32xf32, #tpu.memory_space<vmem>>, vector<8x32xf32>,
    return
  }
  func.func @transform_0(%arg0: i32, %arg1: i32) -> (i32, i32, i32) {
    %c0_i32 = arith.constant 0 : i32
    %c0_i32_0 = arith.constant 0 : i32
    return %arg1, %arg0, %c0_i32 : i32, i32, i32
  }
  func.func @transform_1(%arg0: i32, %arg1: i32) -> (i32, i32) {
    %c0_i32 = arith.constant 0 : i32
    %c0_i32_0 = arith.constant 0 : i32
    %c0_i32_1 = arith.constant 0 : i32
    return %c0_i32, %c0_i32_0 : i32, i32
  }
  func.func @transform_2(%arg0: i32, %arg1: i32) -> (i32, i32, i32) {
    %c0_i32 = arith.constant 0 : i32
    %c0_i32_0 = arith.constant 0 : i32
    return %arg1, %arg0, %c0_i32 : i32, i32, i32
  }
}

</mosaic_0001>

<llo_original>
// kernel: rnn_model_forward.3
$region0: #{rnn_model_forward.3}
  #allocation0 [shape = 'u32[]', space=smem, size = 0x4, offset = 0x4, fixed_abs, tag = 'smem constant byte address 0x4 - core index']
  #allocation1 [shape = 'u32[72,128]{1,0:T(1,128)}', space=vmem, size = 0x9000, scoped, tag = 'internal scratch']
  %s0 = inlined_call_operand.vmem [shape: f32[64,128], index: 0, kind: input, shape index: {}]
  %s1 = inlined_call_operand.vmem [shape: bf16[128,128], index: 1, kind: input, shape index: {}]
  %s2 = inlined_call_operand.vmem [shape: f32[128,1], index: 2, kind: input, shape index: {}]
  %s3 = inlined_call_operand.vmem [shape: f32[3,64], index: 3, kind: input, shape index: {}]
  %s4 = inlined_call_operand.vmem [shape: f32[1,64], index: 4, kind: input, shape index: {}]
  %s5 = inlined_call_operand.vmem [shape: f32[1,8,128], index: 5, kind: output, shape index: {}]
  %s6 = sld [smem:[#allocation0]]
  $region30: #{rnn_model_forward.3} parent=0
    _
  %s8 = ssub.s32 1, %s6
  %s9 = scalar_select 0, %s8, %s6
  // Predicated region
  $region2: #{rnn_model_forward.3} parent=0 // pred_check
    _
  $region3: #{rnn_model_forward.3} parent=0 // pred_check_branch
    %11 = sbr.rel (0) target = $region5
  $region4: #{rnn_model_forward.3} parent=0 // pred_region
    _
  $region5: #{rnn_model_forward.3} parent=0 // pred_fallthru
    _
  // Predicated region
  $region6: #{rnn_model_forward.3} parent=0 // pred_check
    _
  $region7: #{rnn_model_forward.3} parent=0 // pred_check_branch
    %13 = sbr.rel (0) target = $region9
  $region8: #{rnn_model_forward.3} parent=0 // pred_region
    _
  $region9: #{rnn_model_forward.3} parent=0 // pred_fallthru
    _
  // Predicated region
  $region10: #{rnn_model_forward.3} parent=0 // pred_check
    _
  $region11: #{rnn_model_forward.3} parent=0 // pred_check_branch
    %15 = sbr.rel (0) target = $region13
  $region12: #{rnn_model_forward.3} parent=0 // pred_region
    _
  $region13: #{rnn_model_forward.3} parent=0 // pred_fallthru
    _
  // Predicated region
  $region14: #{rnn_model_forward.3} parent=0 // pred_check
    _
  $region15: #{rnn_model_forward.3} parent=0 // pred_check_branch
    %17 = sbr.rel (0) target = $region17
  $region16: #{rnn_model_forward.3} parent=0 // pred_region
    _
  $region17: #{rnn_model_forward.3} parent=0 // pred_fallthru
    _
  // Predicated region
  $region18: #{rnn_model_forward.3} parent=0 // pred_check
    _
  $region19: #{rnn_model_forward.3} parent=0 // pred_check_branch
    %19 = sbr.rel (0) target = $region21
  $region20: #{rnn_model_forward.3} parent=0 // pred_region
    _
  $region21: #{rnn_model_forward.3} parent=0 // pred_fallthru
    _
  %v21 = vld [vmem:[%s0] sm:$0xff]
  %v22 = vld [vmem:[%s0 + $0x8] sm:$0xff]
  %v23 = vld [vmem:[%s0 + $0x10] sm:$0xff]
  %v24 = vld [vmem:[%s0 + $0x18] sm:$0xff]
  %v25 = vld [vmem:[%s0 + $0x20] sm:$0xff]
  %v26 = vld [vmem:[%s0 + $0x28] sm:$0xff]
  %v27 = vld [vmem:[%s0 + $0x30] sm:$0xff]
  %v28 = vld [vmem:[%s0 + $0x38] sm:$0xff]
  %v29 = vpack.c.bf16 %v22, %v21
  %v30 = vpack.c.bf16 %v24, %v23
  %v31 = vpack.c.bf16 %v26, %v25
  %v32 = vpack.c.bf16 %v28, %v27
  %v33 = vld [vmem:[%s1] sm:$0xf]
  %v34 = vld [vmem:[%s1 + $0x4] sm:$0xf]
  %v35 = vld [vmem:[%s1 + $0x8] sm:$0xf]
  %v36 = vld [vmem:[%s1 + $0xc] sm:$0xf]
  %v37 = vld [vmem:[%s1 + $0x10] sm:$0xf]
  %v38 = vld [vmem:[%s1 + $0x14] sm:$0xf]
  %v39 = vld [vmem:[%s1 + $0x18] sm:$0xf]
  %v40 = vld [vmem:[%s1 + $0x1c] sm:$0xf]
  %v41 = vld [vmem:[%s1 + $0x20] sm:$0xf]
  %v42 = vld [vmem:[%s1 + $0x24] sm:$0xf]
  %v43 = vld [vmem:[%s1 + $0x28] sm:$0xf]
  %v44 = vld [vmem:[%s1 + $0x2c] sm:$0xf]
  %v45 = vld [vmem:[%s1 + $0x30] sm:$0xf]
  %v46 = vld [vmem:[%s1 + $0x34] sm:$0xf]
  %v47 = vld [vmem:[%s1 + $0x38] sm:$0xf]
  %v48 = vld [vmem:[%s1 + $0x3c] sm:$0xf]
  %v49 = vld [vmem:[%s2] sm:$0xff]
  %v50 = vld [vmem:[%s2 + $0x8] sm:$0xff]
  %v51 = vld [vmem:[%s2 + $0x10] sm:$0xff]
  %v52 = vld [vmem:[%s2 + $0x18] sm:$0xff]
  %v53 = vld [vmem:[%s2 + $0x20] sm:$0xff]
  %v54 = vld [vmem:[%s2 + $0x28] sm:$0xff]
  %v55 = vld [vmem:[%s2 + $0x30] sm:$0xff]
  %v56 = vld [vmem:[%s2 + $0x38] sm:$0xff]
  %v57 = vld [vmem:[%s2 + $0x40] sm:$0xff]
  %v58 = vld [vmem:[%s2 + $0x48] sm:$0xff]
  %v59 = vld [vmem:[%s2 + $0x50] sm:$0xff]
  %v60 = vld [vmem:[%s2 + $0x58] sm:$0xff]
  %v61 = vld [vmem:[%s2 + $0x60] sm:$0xff]
  %v62 = vld [vmem:[%s2 + $0x68] sm:$0xff]
  %v63 = vld [vmem:[%s2 + $0x70] sm:$0xff]
  %v64 = vld [vmem:[%s2 + $0x78] sm:$0xff]
  %66 = vset.pattern.permute.xlu0 0
  %67 = vperm.xlu0 %66, %v49
  %v68 = vpop.permute.xlu0 %67
  %71 = vset.pattern.permute.xlu0 0
  %72 = vperm.xlu0 %71, %v50
  %v73 = vpop.permute.xlu0 %72
  %76 = vset.pattern.permute.xlu0 0
  %77 = vperm.xlu0 %76, %v51
  %v78 = vpop.permute.xlu0 %77
  %81 = vset.pattern.permute.xlu0 0
  %82 = vperm.xlu0 %81, %v52
  %v83 = vpop.permute.xlu0 %82
  %86 = vset.pattern.permute.xlu0 0
  %87 = vperm.xlu0 %86, %v53
  %v88 = vpop.permute.xlu0 %87
  %90 = vset.pattern.permute.xlu0 0
  %91 = vperm.xlu0 %90, %v54
  %v92 = vpop.permute.xlu0 %91
  %94 = vset.pattern.permute.xlu0 0
  %95 = vperm.xlu0 %94, %v55
  %v96 = vpop.permute.xlu0 %95
  %98 = vset.pattern.permute.xlu0 0
  %99 = vperm.xlu0 %98, %v56
  %v100 = vpop.permute.xlu0 %99
  %102 = vset.pattern.permute.xlu0 0
  %103 = vperm.xlu0 %102, %v57
  %v104 = vpop.permute.xlu0 %103
  %106 = vset.pattern.permute.xlu0 0
  %107 = vperm.xlu0 %106, %v58
  %v108 = vpop.permute.xlu0 %107
  %110 = vset.pattern.permute.xlu0 0
  %111 = vperm.xlu0 %110, %v59
  %v112 = vpop.permute.xlu0 %111
  %114 = vset.pattern.permute.xlu0 0
  %115 = vperm.xlu0 %114, %v60
  %v116 = vpop.permute.xlu0 %115
  %118 = vset.pattern.permute.xlu0 0
  %119 = vperm.xlu0 %118, %v61
  %v120 = vpop.permute.xlu0 %119
  %122 = vset.pattern.permute.xlu0 0
  %123 = vperm.xlu0 %122, %v62
  %v124 = vpop.permute.xlu0 %123
  %126 = vset.pattern.permute.xlu0 0
  %127 = vperm.xlu0 %126, %v63
  %v128 = vpop.permute.xlu0 %127
  %130 = vset.pattern.permute.xlu0 0
  %131 = vperm.xlu0 %130, %v64
  %v132 = vpop.permute.xlu0 %131
  %v149 = vunpack.c.l.b16 %v33
  %v150 = vunpack.c.l.b16 %v34
  %v151 = vunpack.c.l.b16 %v35
  %v152 = vunpack.c.l.b16 %v36
  %v153 = vunpack.c.l.b16 %v37
  %v154 = vunpack.c.l.b16 %v38
  %v155 = vunpack.c.l.b16 %v39
  %v156 = vunpack.c.l.b16 %v40
  %v157 = vunpack.c.l.b16 %v41
  %v158 = vunpack.c.l.b16 %v42
  %v159 = vunpack.c.l.b16 %v43
  %v160 = vunpack.c.l.b16 %v44
  %v161 = vunpack.c.l.b16 %v45
  %v162 = vunpack.c.l.b16 %v46
  %v163 = vunpack.c.l.b16 %v47
  %v164 = vunpack.c.l.b16 %v48
  %v165 = vpack.c.b16 %v150, %v149
  %v166 = vpack.c.b16 %v152, %v151
  %v167 = vpack.c.b16 %v154, %v153
  %v168 = vpack.c.b16 %v156, %v155
  %v169 = vpack.c.b16 %v158, %v157
  %v170 = vpack.c.b16 %v160, %v159
  %v171 = vpack.c.b16 %v162, %v161
  %v172 = vpack.c.b16 %v164, %v163
  %181 = vmatpush.bf16.xpose.msra.mxu0 0
  %182 = vmatpush.bf16.xpose.msra.mxu0 0
  %183 = vmatpush.bf16.xpose.msra.mxu0 0
  %184 = vmatpush.bf16.xpose.msra.mxu0 0
  %185 = vmatpush.bf16.xpose.msra.mxu0 %v32
  %186 = vmatpush.bf16.xpose.msra.mxu0 %v31
  %187 = vmatpush.bf16.xpose.msra.mxu0 %v30
  %188 = vmatpush.bf16.xpose.msra.mxu0 %v29
  %189 = vmatmul.bf16.gmra.mxu0 %v165
  %v190 = vpop.f32.mrf.mxu0
  %v191 = vadd.f32 %v68, %v190
  %v192 = vpop.f32.mrf.mxu0
  %v193 = vadd.f32 %v73, %v192
  %194 = vmatmul.bf16.gmra.mxu0 %v166
  %v195 = vpop.f32.mrf.mxu0
  %v196 = vadd.f32 %v78, %v195
  %v197 = vpop.f32.mrf.mxu0
  %v198 = vadd.f32 %v83, %v197
  %199 = vmatmul.bf16.gmra.mxu0 %v167
  %v200 = vpop.f32.mrf.mxu0
  %v201 = vpop.f32.mrf.mxu0
  %202 = vmatmul.bf16.gmra.mxu0 %v168
  %v203 = vpop.f32.mrf.mxu0
  %v204 = vpop.f32.mrf.mxu0
  %205 = vmatmul.bf16.gmra.mxu0 %v169
  %v206 = vpop.f32.mrf.mxu0
  %v207 = vpop.f32.mrf.mxu0
  %208 = vmatmul.bf16.gmra.mxu0 %v170
  %v209 = vpop.f32.mrf.mxu0
  %v210 = vpop.f32.mrf.mxu0
  %211 = vmatmul.bf16.gmra.mxu0 %v171
  %v212 = vpop.f32.mrf.mxu0
  %v213 = vpop.f32.mrf.mxu0
  %214 = vmatmul.bf16.gmra.mxu0 %v172
  %v215 = vpop.f32.mrf.mxu0
  %v216 = vpop.f32.mrf.mxu0
  %217 = vdwg.mxu0
  %vm218 = vcmask 519168
  %v219 = vsel %vm218, %v191, -inf
  %v220 = vrot.slane %v219, 4
  %v221 = vmax.f32 %v219, %v220
  %v222 = vrot.slane %v221, 2
  %v223 = vmax.f32 %v221, %v222
  %v224 = vrot.slane %v223, 1
  %v225 = vmax.f32 %v223, %v224
  %v226 = vsub.f32 %v191, %v225
  %v227 = vmul.f32 %v226, 1.442695
  %v228 = vpow.pop %v227
  %v229 = vsel %vm218, %v228, 0.0
  %v230 = vrot.slane %v229, 4
  %v231 = vadd.f32 %v229, %v230
  %v232 = vrot.slane %v231, 2
  %v233 = vadd.f32 %v231, %v232
  %v234 = vrot.slane %v233, 1
  %v235 = vadd.f32 %v233, %v234
  %v236 = vrcp.pop %v235
  %v237 = vmul.f32 %v235, %v236
  %v238 = vsub.f32 2.0, %v237
  %v239 = vmul.f32 %v236, %v238
  %v240 = vmul.f32 %v228, %v239
  %v241 = vmul.f32 %v191, 1.442695
  %v242 = vpow.pop %v241
  %v243 = vmax.f32 %v242, 0.0001
  %v244 = vmul.f32 %v193, 1.442695
  %v245 = vpow.pop %v244
  %v246 = vmax.f32 %v245, 0.0001
  %v247 = vtanh.pop %v193
  %v248 = vmax.f32 %v247, -1.0
  %v249 = vmin.f32 %v248, 1.0
  %v250 = vxor.u32 %v198, 2147483648
  %v251 = vmul.f32 %v250, 1.442695
  %v252 = vpow.pop %v251
  %v253 = vadd.f32 %v252, 1.0
  %v254 = vrcp.pop %v253
  %v255 = vmul.f32 %v253, %v254
  %v256 = vsub.f32 1.0, %v255
  %v257 = vmul.f32 %v254, %v256
  %v258 = vadd.f32 %v254, %v257
  %vm259 = vweird.f32 %v253
  %vm260 = vweird.f32 %v254
  %vm261 = vmor %vm259, %vm260
  %v262 = vsel %vm261, %v254, %v258
  %v263 = vand.u32 2147483647, %v253
  %vm264 = vcmp.eq.f32.partialorder %v263, 8.507059e+37
  %v265 = vand.u32 %v253, 2147483648
  %v266 = vor.u32 1.1754944e-38, %v265
  %v267 = vsel %vm264, %v266, %v262
  %v268 = vmul.f32 1.0, %v267
  %v269 = vmax.f32 %v268, 1e-08
  %v270 = vmin.f32 %v269, 1.0
  %v271 = vld [vmem:[%s3] sm:$0x1]
  %v272 = vld [vmem:[%s3 + $0x1] sm:$0x1]
  %v273 = vld [vmem:[%s3 + $0x2] sm:$0x1]
  %v274 = vrcp.pop %v243
  %v275 = vmul.f32 %v243, %v274
  %v276 = vsub.f32 2.0, %v275
  %v277 = vmul.f32 %v274, %v276
  %v278 = vrcp.pop %v246
  %v279 = vmul.f32 %v246, %v278
  %v280 = vsub.f32 2.0, %v279
  %v281 = vmul.f32 %v278, %v280
  %v282 = vmul.f32 %v249, %v249
  %v283 = vsub.f32 1.0, %v282
  %v284 = vrcp.pop %v283
  %v285 = vmul.f32 %v283, %v284
  %v286 = vsub.f32 2.0, %v285
  %v287 = vmul.f32 %v284, %v286
  %v288 = vperm.slane %v271, 0
  %v289 = vsub.f32 %v288, %v196
  %v291 = vrot.slane %v277, 4
  %v293 = vmul.f32 %v289, %v291
  %v294 = vperm.slane %v272, 0
  %v295 = vsub.f32 %v294, %v196
  %v297 = vrot.slane %v281, 4
  %v299 = vmul.f32 %v295, %v297
  %v300 = vmul.f32 %v293, %v293
  %v301 = vmul.f32 %v299, %v299
  %v303 = vrot.slane %v301, 4
  %v305 = vadd.f32 %v300, %v303
  %v306 = vmul.f32 %v249, 2.0
  %v308 = vrot.slane %v293, 4
  %v310 = vmul.f32 %v306, %v308
  %v311 = vmul.f32 %v310, %v299
  %v313 = vrot.slane %v311, 4
  %v315 = vsub.f32 %v305, %v313
  %v316 = vmul.f32 %v277, 0.15915494
  %v317 = vmul.f32 %v316, %v297
  %v318 = vrsqrt.pop %v283
  %v319 = vmul.f32 %v318, %v283
  %v320 = vmul.f32 %v319, %v318
  %v321 = vmul.f32 0.5, %v320
  %v322 = vsub.f32 1.5, %v321
  %v323 = vmul.f32 %v318, %v322
  %vm324 = vweird.f32 %v283
  %vm325 = vweird.f32 %v318
  %vm326 = vmor %vm324, %vm325
  %v327 = vsel %vm326, %v318, %v323
  %v328 = vmul.f32 %v317, %v327
  %v329 = vmul.f32 %v315, -0.5
  %v331 = vrot.slane %v287, 4
  %v333 = vmul.f32 %v329, %v331
  %v334 = vmul.f32 %v333, 1.442695
  %v335 = vpow.pop %v334
  %v337 = vrot.slane %v328, 4
  %v339 = vmul.f32 %v335, %v337
  %v340 = vmul.f32 %v240, %v339
  %v341 = vsel %vm218, %v340, 0.0
  %v342 = vrot.slane %v341, 4
  %v343 = vadd.f32 %v341, %v342
  %v344 = vrot.slane %v343, 2
  %v345 = vadd.f32 %v343, %v344
  %v346 = vrot.slane %v345, 1
  %v347 = vadd.f32 %v345, %v346
  %v348 = vmax.f32 %v347, 1e-08
  %vm349 = vcmp.eq.f32.partialorder %v273, 1.0
  %v350 = vsub.f32 1.0, %v270
  %v351 = vsel %vm349, %v270, %v350
  %v352 = vlog2.pop %v348
  %v353 = vmul.f32 %v352, 0.6931472
  %v354 = vlog2.pop %v351
  %v355 = vmul.f32 %v354, 0.6931472
  %v356 = vadd.f32 %v353, %v355
  %v357 = vsub.f32 0.0, %v356
  %v358 = vld [vmem:[%s4] sm:$0x1]
  %vm359 = vcmp.gt.f32.partialorder %v358, 0.0
  %vm360 = vcmp.ne.f32.partialorder %v357, %v357
  %vm361 = vmxor %vm360, 1
  %vm362 = vmand %vm359, %vm361
  %v363 = vsel %vm362, %v357, 0.0
  %vm364 = vcmask 516096
  %v365 = vsel %vm364, %v363, 0.0
  %366 = vadd.xlane.f32.xlu0 %v365
  %v367 = vpop.xlane.xlu0 %366
  %v368 = vrot.slane %v367, 4
  %v369 = vadd.f32 %v367, %v368
  %v370 = vrot.slane %v369, 2
  %v371 = vadd.f32 %v369, %v370
  %v372 = vrot.slane %v371, 1
  %v373 = vadd.f32 %v371, %v372
  %s374 = vtos %v373
  %v375 = vsel %vm362, 1, 0
  %v376 = vcvt.s32.f32 %v375
  %v377 = vsel %vm364, %v376, 0.0
  %378 = vadd.xlane.f32.xlu0 %v377
  %v379 = vpop.xlane.xlu0 %378
  %v380 = vrot.slane %v379, 4
  %v381 = vadd.f32 %v379, %v380
  %v382 = vrot.slane %v381, 2
  %v383 = vadd.f32 %v381, %v382
  %v384 = vrot.slane %v383, 1
  %v385 = vadd.f32 %v383, %v384
  %s386 = vtos %v385
  %v387 = vlaneseq
  %v388 = vand.u32 %v387, 127
  %vm389 = vcmp.eq.s32.totalorder %v388, 0
  %vm390 = vcmp.eq.s32.totalorder %v388, 1
  %v391 = vstv %s386
  %v392 = vsel %vm390, %v391, 0.0
  %v393 = vstv %s374
  %v394 = vsel %vm389, %v393, %v392
  %395 = vst [vmem:[%s5] sm:$0xff] %v394
  // Predicated region
  $region22: #{rnn_model_forward.3} parent=0 // pred_check
    _
  $region23: #{rnn_model_forward.3} parent=0 // pred_check_branch
    %397 = sbr.rel (0) target = $region25
  $region24: #{rnn_model_forward.3} parent=0 // pred_region
    _
  $region25: #{rnn_model_forward.3} parent=0 // pred_fallthru
    _
  // Predicated region
  $region26: #{rnn_model_forward.3} parent=0 // pred_check
    _
  $region27: #{rnn_model_forward.3} parent=0 // pred_check_branch
    %399 = sbr.rel (0) target = $region29
  $region28: #{rnn_model_forward.3} parent=0 // pred_region
    _
  $region29: #{rnn_model_forward.3} parent=0 // pred_fallthru
    _

// kernel: rnn_model_forward.2
$region0: #{rnn_model_forward.2}
  #allocation0 [shape = 'u32[]', space=smem, size = 0x4, offset = 0x4, fixed_abs, tag = 'smem constant byte address 0x4 - core index']
  #allocation1 [shape = 'u32[72,128]{1,0:T(1,128)}', space=vmem, size = 0x9000, scoped, tag = 'internal scratch']
  #allocation2 [shape = 'f32[8,128]{1,0:T(8,128)}', space=vmem, size = 0x1000, scoped, tag = 'scratch operand']
  #allocation3 [shape = 'f32[8,32]{1,0:T(8,128)}', space=vmem, size = 0x1000, scoped, tag = 'scratch operand']
  %s0 = inlined_call_operand.vmem [shape: bf16[8,8,128], index: 0, kind: input, shape index: {}]
  %s1 = inlined_call_operand.vmem [shape: bf16[128,128], index: 1, kind: input, shape index: {}]
  %s2 = inlined_call_operand.vmem [shape: f32[8,8,128], index: 2, kind: output, shape index: {}]
  %s3 = sld [smem:[#allocation0]]
  $region22: #{rnn_model_forward.2} parent=0
    _
  %s5 = ssub.s32 1, %s3
  %s6 = scalar_select 0, %s5, %s3
  // Predicated region
  $region2: #{rnn_model_forward.2} parent=0 // pred_check
    _
  $region3: #{rnn_model_forward.2} parent=0 // pred_check_branch
    %8 = sbr.rel (0) target = $region5
  $region4: #{rnn_model_forward.2} parent=0 // pred_region
    _
  $region5: #{rnn_model_forward.2} parent=0 // pred_fallthru
    _
  // Predicated region
  $region6: #{rnn_model_forward.2} parent=0 // pred_check
    _
  $region7: #{rnn_model_forward.2} parent=0 // pred_check_branch
    %10 = sbr.rel (0) target = $region9
  $region8: #{rnn_model_forward.2} parent=0 // pred_region
    _
  $region9: #{rnn_model_forward.2} parent=0 // pred_fallthru
    _
  %p11 = scmp.eq.s32.totalorder 0, 0
  // Predicated region
  $region10: #{rnn_model_forward.2} parent=0 // pred_check
    %p12 = pneg %p11
  $region11: #{rnn_model_forward.2} parent=0 // pred_check_branch
    %14 = sbr.rel (%p12) target = $region13
  $region12: #{rnn_model_forward.2} parent=0 // pred_region
    %15 = vst [vmem:[#allocation2] sm:$0xff] 0.0
    %vm16 = vcmask 261120
    %17 = vst.msk [vmem:[#allocation3] sm:$0xff] %vm16, 0.0
  $region13: #{rnn_model_forward.2} parent=0 // pred_fallthru
    _
  %v18 = vld [vmem:[#allocation2] sm:$0xff]
  %v19 = vld [vmem:[#allocation3] sm:$0xff]
  %v20 = vld [vmem:[%s0] sm:$0xf]
  %v21 = vunpack.c.l.bf16 %v20
  %v22 = vpack.c.bf16 %v18, %v18
  %v23 = vld [vmem:[%s1] sm:$0xf]
  %v24 = vld [vmem:[%s1 + $0x4] sm:$0xf]
  %v25 = vld [vmem:[%s1 + $0x8] sm:$0xf]
  %v26 = vld [vmem:[%s1 + $0xc] sm:$0xf]
  %v27 = vld [vmem:[%s1 + $0x10] sm:$0xf]
  %v28 = vld [vmem:[%s1 + $0x14] sm:$0xf]
  %v29 = vld [vmem:[%s1 + $0x18] sm:$0xf]
  %v30 = vld [vmem:[%s1 + $0x1c] sm:$0xf]
  %v31 = vld [vmem:[%s1 + $0x20] sm:$0xf]
  %v32 = vld [vmem:[%s1 + $0x24] sm:$0xf]
  %v33 = vld [vmem:[%s1 + $0x28] sm:$0xf]
  %v34 = vld [vmem:[%s1 + $0x2c] sm:$0xf]
  %v35 = vld [vmem:[%s1 + $0x30] sm:$0xf]
  %v36 = vld [vmem:[%s1 + $0x34] sm:$0xf]
  %v37 = vld [vmem:[%s1 + $0x38] sm:$0xf]
  %v38 = vld [vmem:[%s1 + $0x3c] sm:$0xf]
  %v55 = vunpack.c.l.b16 %v23
  %v56 = vunpack.c.l.b16 %v24
  %v57 = vunpack.c.l.b16 %v25
  %v58 = vunpack.c.l.b16 %v26
  %v59 = vunpack.c.l.b16 %v27
  %v60 = vunpack.c.l.b16 %v28
  %v61 = vunpack.c.l.b16 %v29
  %v62 = vunpack.c.l.b16 %v30
  %v63 = vunpack.c.l.b16 %v31
  %v64 = vunpack.c.l.b16 %v32
  %v65 = vunpack.c.l.b16 %v33
  %v66 = vunpack.c.l.b16 %v34
  %v67 = vunpack.c.l.b16 %v35
  %v68 = vunpack.c.l.b16 %v36
  %v69 = vunpack.c.l.b16 %v37
  %v70 = vunpack.c.l.b16 %v38
  %v71 = vpack.c.b16 %v56, %v55
  %v72 = vpack.c.b16 %v58, %v57
  %v73 = vpack.c.b16 %v60, %v59
  %v74 = vpack.c.b16 %v62, %v61
  %v75 = vpack.c.b16 %v64, %v63
  %v76 = vpack.c.b16 %v66, %v65
  %v77 = vpack.c.b16 %v68, %v67
  %v78 = vpack.c.b16 %v70, %v69
  %87 = vmatpush.bf16.msra.mxu0 %v78
  %88 = vmatpush.bf16.msra.mxu0 %v77
  %89 = vmatpush.bf16.msra.mxu0 %v76
  %90 = vmatpush.bf16.msra.mxu0 %v75
  %91 = vmatpush.bf16.msra.mxu0 %v74
  %92 = vmatpush.bf16.msra.mxu0 %v73
  %93 = vmatpush.bf16.msra.mxu0 %v72
  %94 = vmatpush.bf16.msra.mxu0 %v71
  %95 = vmatmul.bf16.gmra.mxu0 %v22
  %v96 = vpop.f32.mrf.mxu0
  %v97 = vadd.f32 0.0, %v96
  %v98 = vpop.f32.mrf.mxu0
  %99 = vdwg.mxu0
  %v100 = vadd.f32 %v21, %v97
  %v101 = vmul.f32 %v100, 0.5
  %v102 = vtanh.pop %v101
  %v103 = vadd.f32 %v102, 1.0
  %v104 = vmul.f32 %v103, 0.5
  %v105 = vtanh.pop %v100
  %107 = vrot.lane.b32.xlu0 %v19, 32
  %v108 = vpop.permute.xlu0 %107
  %v110 = vmul.f32 %v104, %v108
  %112 = vrot.lane.b32.xlu0 %v105, 64
  %v113 = vpop.permute.xlu0 %112
  %v115 = vmul.f32 %v104, %v113
  %117 = vrot.lane.b32.xlu0 %v115, 32
  %v118 = vpop.permute.xlu0 %117
  %v120 = vadd.f32 %v110, %v118
  %v121 = vtanh.pop %v120
  %123 = vrot.lane.b32.xlu0 %v121, 64
  %v124 = vpop.permute.xlu0 %123
  %v126 = vmul.f32 %v104, %v124
  %128 = vrot.lane.b32.xlu0 %v126, 32
  %v129 = vpop.permute.xlu0 %128
  %vm131 = vcmask 261120
  %v132 = vsel %vm131, %v129, 0.0
  %133 = vst [vmem:[%s2] sm:$0xff] %v132
  %s134 = scalar_lea.vmem %s0, 4
  %v135 = vld [vmem:[%s134] sm:$0xf]
  %v136 = vunpack.c.l.bf16 %v135
  %v137 = vpack.c.bf16 %v132, %v132
  %v138 = vld [vmem:[%s1] sm:$0xf]
  %v139 = vld [vmem:[%s1 + $0x4] sm:$0xf]
  %v140 = vld [vmem:[%s1 + $0x8] sm:$0xf]
  %v141 = vld [vmem:[%s1 + $0xc] sm:$0xf]
  %v142 = vld [vmem:[%s1 + $0x10] sm:$0xf]
  %v143 = vld [vmem:[%s1 + $0x14] sm:$0xf]
  %v144 = vld [vmem:[%s1 + $0x18] sm:$0xf]
  %v145 = vld [vmem:[%s1 + $0x1c] sm:$0xf]
  %v146 = vld [vmem:[%s1 + $0x20] sm:$0xf]
  %v147 = vld [vmem:[%s1 + $0x24] sm:$0xf]
  %v148 = vld [vmem:[%s1 + $0x28] sm:$0xf]
  %v149 = vld [vmem:[%s1 + $0x2c] sm:$0xf]
  %v150 = vld [vmem:[%s1 + $0x30] sm:$0xf]
  %v151 = vld [vmem:[%s1 + $0x34] sm:$0xf]
  %v152 = vld [vmem:[%s1 + $0x38] sm:$0xf]
  %v153 = vld [vmem:[%s1 + $0x3c] sm:$0xf]
  %v170 = vunpack.c.l.b16 %v138
  %v171 = vunpack.c.l.b16 %v139
  %v172 = vunpack.c.l.b16 %v140
  %v173 = vunpack.c.l.b16 %v141
  %v174 = vunpack.c.l.b16 %v142
  %v175 = vunpack.c.l.b16 %v143
  %v176 = vunpack.c.l.b16 %v144
  %v177 = vunpack.c.l.b16 %v145
  %v178 = vunpack.c.l.b16 %v146
  %v179 = vunpack.c.l.b16 %v147
  %v180 = vunpack.c.l.b16 %v148
  %v181 = vunpack.c.l.b16 %v149
  %v182 = vunpack.c.l.b16 %v150
  %v183 = vunpack.c.l.b16 %v151
  %v184 = vunpack.c.l.b16 %v152
  %v185 = vunpack.c.l.b16 %v153
  %v186 = vpack.c.b16 %v171, %v170
  %v187 = vpack.c.b16 %v173, %v172
  %v188 = vpack.c.b16 %v175, %v174
  %v189 = vpack.c.b16 %v177, %v176
  %v190 = vpack.c.b16 %v179, %v178
  %v191 = vpack.c.b16 %v181, %v180
  %v192 = vpack.c.b16 %v183, %v182
  %v193 = vpack.c.b16 %v185, %v184
  %202 = vmatpush.bf16.msra.mxu0 %v193
  %203 = vmatpush.bf16.msra.mxu0 %v192
  %204 = vmatpush.bf16.msra.mxu0 %v191
  %205 = vmatpush.bf16.msra.mxu0 %v190
  %206 = vmatpush.bf16.msra.mxu0 %v189
  %207 = vmatpush.bf16.msra.mxu0 %v188
  %208 = vmatpush.bf16.msra.mxu0 %v187
  %209 = vmatpush.bf16.msra.mxu0 %v186
  %210 = vmatmul.bf16.gmra.mxu0 %v137
  %v211 = vpop.f32.mrf.mxu0
  %v212 = vadd.f32 0.0, %v211
  %v213 = vpop.f32.mrf.mxu0
  %214 = vdwg.mxu0
  %v215 = vadd.f32 %v136, %v212
  %v216 = vmul.f32 %v215, 0.5
  %v217 = vtanh.pop %v216
  %v218 = vadd.f32 %v217, 1.0
  %v219 = vmul.f32 %v218, 0.5
  %v220 = vtanh.pop %v215
  %v221 = vmul.f32 %v219, %v120
  %223 = vrot.lane.b32.xlu0 %v220, 64
  %v224 = vpop.permute.xlu0 %223
  %v226 = vmul.f32 %v219, %v224
  %228 = vrot.lane.b32.xlu0 %v226, 32
  %v229 = vpop.permute.xlu0 %228
  %v231 = vadd.f32 %v221, %v229
  %v232 = vtanh.pop %v231
  %234 = vrot.lane.b32.xlu0 %v232, 64
  %v235 = vpop.permute.xlu0 %234
  %v237 = vmul.f32 %v219, %v235
  %239 = vrot.lane.b32.xlu0 %v237, 32
  %v240 = vpop.permute.xlu0 %239
  %v242 = vsel %vm131, %v240, 0.0
  %s243 = scalar_lea.vmem %s2, 8
  %244 = vst [vmem:[%s243] sm:$0xff] %v242
  %s245 = scalar_lea.vmem %s0, 8
  %v246 = vld [vmem:[%s245] sm:$0xf]
  %v247 = vunpack.c.l.bf16 %v246
  %v248 = vpack.c.bf16 %v242, %v242
  %v249 = vld [vmem:[%s1] sm:$0xf]
  %v250 = vld [vmem:[%s1 + $0x4] sm:$0xf]
  %v251 = vld [vmem:[%s1 + $0x8] sm:$0xf]
  %v252 = vld [vmem:[%s1 + $0xc] sm:$0xf]
  %v253 = vld [vmem:[%s1 + $0x10] sm:$0xf]
  %v254 = vld [vmem:[%s1 + $0x14] sm:$0xf]
  %v255 = vld [vmem:[%s1 + $0x18] sm:$0xf]
  %v256 = vld [vmem:[%s1 + $0x1c] sm:$0xf]
  %v257 = vld [vmem:[%s1 + $0x20] sm:$0xf]
  %v258 = vld [vmem:[%s1 + $0x24] sm:$0xf]
  %v259 = vld [vmem:[%s1 + $0x28] sm:$0xf]
  %v260 = vld [vmem:[%s1 + $0x2c] sm:$0xf]
  %v261 = vld [vmem:[%s1 + $0x30] sm:$0xf]
  %v262 = vld [vmem:[%s1 + $0x34] sm:$0xf]
  %v263 = vld [vmem:[%s1 + $0x38] sm:$0xf]
  %v264 = vld [vmem:[%s1 + $0x3c] sm:$0xf]
  %v281 = vunpack.c.l.b16 %v249
  %v282 = vunpack.c.l.b16 %v250
  %v283 = vunpack.c.l.b16 %v251
  %v284 = vunpack.c.l.b16 %v252
  %v285 = vunpack.c.l.b16 %v253
  %v286 = vunpack.c.l.b16 %v254
  %v287 = vunpack.c.l.b16 %v255
  %v288 = vunpack.c.l.b16 %v256
  %v289 = vunpack.c.l.b16 %v257
  %v290 = vunpack.c.l.b16 %v258
  %v291 = vunpack.c.l.b16 %v259
  %v292 = vunpack.c.l.b16 %v260
  %v293 = vunpack.c.l.b16 %v261
  %v294 = vunpack.c.l.b16 %v262
  %v295 = vunpack.c.l.b16 %v263
  %v296 = vunpack.c.l.b16 %v264
  %v297 = vpack.c.b16 %v282, %v281
  %v298 = vpack.c.b16 %v284, %v283
  %v299 = vpack.c.b16 %v286, %v285
  %v300 = vpack.c.b16 %v288, %v287
  %v301 = vpack.c.b16 %v290, %v289
  %v302 = vpack.c.b16 %v292, %v291
  %v303 = vpack.c.b16 %v294, %v293
  %v304 = vpack.c.b16 %v296, %v295
  %313 = vmatpush.bf16.msra.mxu0 %v304
  %314 = vmatpush.bf16.msra.mxu0 %v303
  %315 = vmatpush.bf16.msra.mxu0 %v302
  %316 = vmatpush.bf16.msra.mxu0 %v301
  %317 = vmatpush.bf16.msra.mxu0 %v300
  %318 = vmatpush.bf16.msra.mxu0 %v299
  %319 = vmatpush.bf16.msra.mxu0 %v298
  %320 = vmatpush.bf16.msra.mxu0 %v297
  %321 = vmatmul.bf16.gmra.mxu0 %v248
  %v322 = vpop.f32.mrf.mxu0
  %v323 = vadd.f32 0.0, %v322
  %v324 = vpop.f32.mrf.mxu0
  %325 = vdwg.mxu0
  %v326 = vadd.f32 %v247, %v323
  %v327 = vmul.f32 %v326, 0.5
  %v328 = vtanh.pop %v327
  %v329 = vadd.f32 %v328, 1.0
  %v330 = vmul.f32 %v329, 0.5
  %v331 = vtanh.pop %v326
  %v332 = vmul.f32 %v330, %v231
  %334 = vrot.lane.b32.xlu0 %v331, 64
  %v335 = vpop.permute.xlu0 %334
  %v337 = vmul.f32 %v330, %v335
  %339 = vrot.lane.b32.xlu0 %v337, 32
  %v340 = vpop.permute.xlu0 %339
  %v342 = vadd.f32 %v332, %v340
  %v343 = vtanh.pop %v342
  %345 = vrot.lane.b32.xlu0 %v343, 64
  %v346 = vpop.permute.xlu0 %345
  %v348 = vmul.f32 %v330, %v346
  %350 = vrot.lane.b32.xlu0 %v348, 32
  %v351 = vpop.permute.xlu0 %350
  %v353 = vsel %vm131, %v351, 0.0
  %s354 = scalar_lea.vmem %s2, 16
  %355 = vst [vmem:[%s354] sm:$0xff] %v353
  %s356 = scalar_lea.vmem %s0, 12
  %v357 = vld [vmem:[%s356] sm:$0xf]
  %v358 = vunpack.c.l.bf16 %v357
  %v359 = vpack.c.bf16 %v353, %v353
  %v360 = vld [vmem:[%s1] sm:$0xf]
  %v361 = vld [vmem:[%s1 + $0x4] sm:$0xf]
  %v362 = vld [vmem:[%s1 + $0x8] sm:$0xf]
  %v363 = vld [vmem:[%s1 + $0xc] sm:$0xf]
  %v364 = vld [vmem:[%s1 + $0x10] sm:$0xf]
  %v365 = vld [vmem:[%s1 + $0x14] sm:$0xf]
  %v366 = vld [vmem:[%s1 + $0x18] sm:$0xf]
  %v367 = vld [vmem:[%s1 + $0x1c] sm:$0xf]
  %v368 = vld [vmem:[%s1 + $0x20] sm:$0xf]
  %v369 = vld [vmem:[%s1 + $0x24] sm:$0xf]
  %v370 = vld [vmem:[%s1 + $0x28] sm:$0xf]
  %v371 = vld [vmem:[%s1 + $0x2c] sm:$0xf]
  %v372 = vld [vmem:[%s1 + $0x30] sm:$0xf]
  %v373 = vld [vmem:[%s1 + $0x34] sm:$0xf]
  %v374 = vld [vmem:[%s1 + $0x38] sm:$0xf]
  %v375 = vld [vmem:[%s1 + $0x3c] sm:$0xf]
  %v392 = vunpack.c.l.b16 %v360
  %v393 = vunpack.c.l.b16 %v361
  %v394 = vunpack.c.l.b16 %v362
  %v395 = vunpack.c.l.b16 %v363
  %v396 = vunpack.c.l.b16 %v364
  %v397 = vunpack.c.l.b16 %v365
  %v398 = vunpack.c.l.b16 %v366
  %v399 = vunpack.c.l.b16 %v367
  %v400 = vunpack.c.l.b16 %v368
  %v401 = vunpack.c.l.b16 %v369
  %v402 = vunpack.c.l.b16 %v370
  %v403 = vunpack.c.l.b16 %v371
  %v404 = vunpack.c.l.b16 %v372
  %v405 = vunpack.c.l.b16 %v373
  %v406 = vunpack.c.l.b16 %v374
  %v407 = vunpack.c.l.b16 %v375
  %v408 = vpack.c.b16 %v393, %v392
  %v409 = vpack.c.b16 %v395, %v394
  %v410 = vpack.c.b16 %v397, %v396
  %v411 = vpack.c.b16 %v399, %v398
  %v412 = vpack.c.b16 %v401, %v400
  %v413 = vpack.c.b16 %v403, %v402
  %v414 = vpack.c.b16 %v405, %v404
  %v415 = vpack.c.b16 %v407, %v406
  %424 = vmatpush.bf16.msra.mxu0 %v415
  %425 = vmatpush.bf16.msra.mxu0 %v414
  %426 = vmatpush.bf16.msra.mxu0 %v413
  %427 = vmatpush.bf16.msra.mxu0 %v412
  %428 = vmatpush.bf16.msra.mxu0 %v411
  %429 = vmatpush.bf16.msra.mxu0 %v410
  %430 = vmatpush.bf16.msra.mxu0 %v409
  %431 = vmatpush.bf16.msra.mxu0 %v408
  %432 = vmatmul.bf16.gmra.mxu0 %v359
  %v433 = vpop.f32.mrf.mxu0
  %v434 = vadd.f32 0.0, %v433
  %v435 = vpop.f32.mrf.mxu0
  %436 = vdwg.mxu0
  %v437 = vadd.f32 %v358, %v434
  %v438 = vmul.f32 %v437, 0.5
  %v439 = vtanh.pop %v438
  %v440 = vadd.f32 %v439, 1.0
  %v441 = vmul.f32 %v440, 0.5
  %v442 = vtanh.pop %v437
  %v443 = vmul.f32 %v441, %v342
  %445 = vrot.lane.b32.xlu0 %v442, 64
  %v446 = vpop.permute.xlu0 %445
  %v448 = vmul.f32 %v441, %v446
  %450 = vrot.lane.b32.xlu0 %v448, 32
  %v451 = vpop.permute.xlu0 %450
  %v453 = vadd.f32 %v443, %v451
  %v454 = vtanh.pop %v453
  %456 = vrot.lane.b32.xlu0 %v454, 64
  %v457 = vpop.permute.xlu0 %456
  %v459 = vmul.f32 %v441, %v457
  %461 = vrot.lane.b32.xlu0 %v459, 32
  %v462 = vpop.permute.xlu0 %461
  %v464 = vsel %vm131, %v462, 0.0
  %s465 = scalar_lea.vmem %s2, 24
  %466 = vst [vmem:[%s465] sm:$0xff] %v464
  %s467 = scalar_lea.vmem %s0, 16
  %v468 = vld [vmem:[%s467] sm:$0xf]
  %v469 = vunpack.c.l.bf16 %v468
  %v470 = vpack.c.bf16 %v464, %v464
  %v471 = vld [vmem:[%s1] sm:$0xf]
  %v472 = vld [vmem:[%s1 + $0x4] sm:$0xf]
  %v473 = vld [vmem:[%s1 + $0x8] sm:$0xf]
  %v474 = vld [vmem:[%s1 + $0xc] sm:$0xf]
  %v475 = vld [vmem:[%s1 + $0x10] sm:$0xf]
  %v476 = vld [vmem:[%s1 + $0x14] sm:$0xf]
  %v477 = vld [vmem:[%s1 + $0x18] sm:$0xf]
  %v478 = vld [vmem:[%s1 + $0x1c] sm:$0xf]
  %v479 = vld [vmem:[%s1 + $0x20] sm:$0xf]
  %v480 = vld [vmem:[%s1 + $0x24] sm:$0xf]
  %v481 = vld [vmem:[%s1 + $0x28] sm:$0xf]
  %v482 = vld [vmem:[%s1 + $0x2c] sm:$0xf]
  %v483 = vld [vmem:[%s1 + $0x30] sm:$0xf]
  %v484 = vld [vmem:[%s1 + $0x34] sm:$0xf]
  %v485 = vld [vmem:[%s1 + $0x38] sm:$0xf]
  %v486 = vld [vmem:[%s1 + $0x3c] sm:$0xf]
  %v503 = vunpack.c.l.b16 %v471
  %v504 = vunpack.c.l.b16 %v472
  %v505 = vunpack.c.l.b16 %v473
  %v506 = vunpack.c.l.b16 %v474
  %v507 = vunpack.c.l.b16 %v475
  %v508 = vunpack.c.l.b16 %v476
  %v509 = vunpack.c.l.b16 %v477
  %v510 = vunpack.c.l.b16 %v478
  %v511 = vunpack.c.l.b16 %v479
  %v512 = vunpack.c.l.b16 %v480
  %v513 = vunpack.c.l.b16 %v481
  %v514 = vunpack.c.l.b16 %v482
  %v515 = vunpack.c.l.b16 %v483
  %v516 = vunpack.c.l.b16 %v484
  %v517 = vunpack.c.l.b16 %v485
  %v518 = vunpack.c.l.b16 %v486
  %v519 = vpack.c.b16 %v504, %v503
  %v520 = vpack.c.b16 %v506, %v505
  %v521 = vpack.c.b16 %v508, %v507
  %v522 = vpack.c.b16 %v510, %v509
  %v523 = vpack.c.b16 %v512, %v511
  %v524 = vpack.c.b16 %v514, %v513
  %v525 = vpack.c.b16 %v516, %v515
  %v526 = vpack.c.b16 %v518, %v517
  %535 = vmatpush.bf16.msra.mxu0 %v526
  %536 = vmatpush.bf16.msra.mxu0 %v525
  %537 = vmatpush.bf16.msra.mxu0 %v524
  %538 = vmatpush.bf16.msra.mxu0 %v523
  %539 = vmatpush.bf16.msra.mxu0 %v522
  %540 = vmatpush.bf16.msra.mxu0 %v521
  %541 = vmatpush.bf16.msra.mxu0 %v520
  %542 = vmatpush.bf16.msra.mxu0 %v519
  %543 = vmatmul.bf16.gmra.mxu0 %v470
  %v544 = vpop.f32.mrf.mxu0
  %v545 = vadd.f32 0.0, %v544
  %v546 = vpop.f32.mrf.mxu0
  %547 = vdwg.mxu0
  %v548 = vadd.f32 %v469, %v545
  %v549 = vmul.f32 %v548, 0.5
  %v550 = vtanh.pop %v549
  %v551 = vadd.f32 %v550, 1.0
  %v552 = vmul.f32 %v551, 0.5
  %v553 = vtanh.pop %v548
  %v554 = vmul.f32 %v552, %v453
  %556 = vrot.lane.b32.xlu0 %v553, 64
  %v557 = vpop.permute.xlu0 %556
  %v559 = vmul.f32 %v552, %v557
  %561 = vrot.lane.b32.xlu0 %v559, 32
  %v562 = vpop.permute.xlu0 %561
  %v564 = vadd.f32 %v554, %v562
  %v565 = vtanh.pop %v564
  %567 = vrot.lane.b32.xlu0 %v565, 64
  %v568 = vpop.permute.xlu0 %567
  %v570 = vmul.f32 %v552, %v568
  %572 = vrot.lane.b32.xlu0 %v570, 32
  %v573 = vpop.permute.xlu0 %572
  %v575 = vsel %vm131, %v573, 0.0
  %s576 = scalar_lea.vmem %s2, 32
  %577 = vst [vmem:[%s576] sm:$0xff] %v575
  %s578 = scalar_lea.vmem %s0, 20
  %v579 = vld [vmem:[%s578] sm:$0xf]
  %v580 = vunpack.c.l.bf16 %v579
  %v581 = vpack.c.bf16 %v575, %v575
  %v582 = vld [vmem:[%s1] sm:$0xf]
  %v583 = vld [vmem:[%s1 + $0x4] sm:$0xf]
  %v584 = vld [vmem:[%s1 + $0x8] sm:$0xf]
  %v585 = vld [vmem:[%s1 + $0xc] sm:$0xf]
  %v586 = vld [vmem:[%s1 + $0x10] sm:$0xf]
  %v587 = vld [vmem:[%s1 + $0x14] sm:$0xf]
  %v588 = vld [vmem:[%s1 + $0x18] sm:$0xf]
  %v589 = vld [vmem:[%s1 + $0x1c] sm:$0xf]
  %v590 = vld [vmem:[%s1 + $0x20] sm:$0xf]
  %v591 = vld [vmem:[%s1 + $0x24] sm:$0xf]
  %v592 = vld [vmem:[%s1 + $0x28] sm:$0xf]
  %v593 = vld [vmem:[%s1 + $0x2c] sm:$0xf]
  %v594 = vld [vmem:[%s1 + $0x30] sm:$0xf]
  %v595 = vld [vmem:[%s1 + $0x34] sm:$0xf]
  %v596 = vld [vmem:[%s1 + $0x38] sm:$0xf]
  %v597 = vld [vmem:[%s1 + $0x3c] sm:$0xf]
  %v614 = vunpack.c.l.b16 %v582
  %v615 = vunpack.c.l.b16 %v583
  %v616 = vunpack.c.l.b16 %v584
  %v617 = vunpack.c.l.b16 %v585
  %v618 = vunpack.c.l.b16 %v586
  %v619 = vunpack.c.l.b16 %v587
  %v620 = vunpack.c.l.b16 %v588
  %v621 = vunpack.c.l.b16 %v589
  %v622 = vunpack.c.l.b16 %v590
  %v623 = vunpack.c.l.b16 %v591
  %v624 = vunpack.c.l.b16 %v592
  %v625 = vunpack.c.l.b16 %v593
  %v626 = vunpack.c.l.b16 %v594
  %v627 = vunpack.c.l.b16 %v595
  %v628 = vunpack.c.l.b16 %v596
  %v629 = vunpack.c.l.b16 %v597
  %v630 = vpack.c.b16 %v615, %v614
  %v631 = vpack.c.b16 %v617, %v616
  %v632 = vpack.c.b16 %v619, %v618
  %v633 = vpack.c.b16 %v621, %v620
  %v634 = vpack.c.b16 %v623, %v622
  %v635 = vpack.c.b16 %v625, %v624
  %v636 = vpack.c.b16 %v627, %v626
  %v637 = vpack.c.b16 %v629, %v628
  %646 = vmatpush.bf16.msra.mxu0 %v637
  %647 = vmatpush.bf16.msra.mxu0 %v636
  %648 = vmatpush.bf16.msra.mxu0 %v635
  %649 = vmatpush.bf16.msra.mxu0 %v634
  %650 = vmatpush.bf16.msra.mxu0 %v633
  %651 = vmatpush.bf16.msra.mxu0 %v632
  %652 = vmatpush.bf16.msra.mxu0 %v631
  %653 = vmatpush.bf16.msra.mxu0 %v630
  %654 = vmatmul.bf16.gmra.mxu0 %v581
  %v655 = vpop.f32.mrf.mxu0
  %v656 = vadd.f32 0.0, %v655
  %v657 = vpop.f32.mrf.mxu0
  %658 = vdwg.mxu0
  %v659 = vadd.f32 %v580, %v656
  %v660 = vmul.f32 %v659, 0.5
  %v661 = vtanh.pop %v660
  %v662 = vadd.f32 %v661, 1.0
  %v663 = vmul.f32 %v662, 0.5
  %v664 = vtanh.pop %v659
  %v665 = vmul.f32 %v663, %v564
  %667 = vrot.lane.b32.xlu0 %v664, 64
  %v668 = vpop.permute.xlu0 %667
  %v670 = vmul.f32 %v663, %v668
  %672 = vrot.lane.b32.xlu0 %v670, 32
  %v673 = vpop.permute.xlu0 %672
  %v675 = vadd.f32 %v665, %v673
  %v676 = vtanh.pop %v675
  %678 = vrot.lane.b32.xlu0 %v676, 64
  %v679 = vpop.permute.xlu0 %678
  %v681 = vmul.f32 %v663, %v679
  %683 = vrot.lane.b32.xlu0 %v681, 32
  %v684 = vpop.permute.xlu0 %683
  %v686 = vsel %vm131, %v684, 0.0
  %s687 = scalar_lea.vmem %s2, 40
  %688 = vst [vmem:[%s687] sm:$0xff] %v686
  %s689 = scalar_lea.vmem %s0, 24
  %v690 = vld [vmem:[%s689] sm:$0xf]
  %v691 = vunpack.c.l.bf16 %v690
  %v692 = vpack.c.bf16 %v686, %v686
  %v693 = vld [vmem:[%s1] sm:$0xf]
  %v694 = vld [vmem:[%s1 + $0x4] sm:$0xf]
  %v695 = vld [vmem:[%s1 + $0x8] sm:$0xf]
  %v696 = vld [vmem:[%s1 + $0xc] sm:$0xf]
  %v697 = vld [vmem:[%s1 + $0x10] sm:$0xf]
  %v698 = vld [vmem:[%s1 + $0x14] sm:$0xf]
  %v699 = vld [vmem:[%s1 + $0x18] sm:$0xf]
  %v700 = vld [vmem:[%s1 + $0x1c] sm:$0xf]
  %v701 = vld [vmem:[%s1 + $0x20] sm:$0xf]
  %v702 = vld [vmem:[%s1 + $0x24] sm:$0xf]
  %v703 = vld [vmem:[%s1 + $0x28] sm:$0xf]
  %v704 = vld [vmem:[%s1 + $0x2c] sm:$0xf]
  %v705 = vld [vmem:[%s1 + $0x30] sm:$0xf]
  %v706 = vld [vmem:[%s1 + $0x34] sm:$0xf]
  %v707 = vld [vmem:[%s1 + $0x38] sm:$0xf]
  %v708 = vld [vmem:[%s1 + $0x3c] sm:$0xf]
  %v725 = vunpack.c.l.b16 %v693
  %v726 = vunpack.c.l.b16 %v694
  %v727 = vunpack.c.l.b16 %v695
  %v728 = vunpack.c.l.b16 %v696
  %v729 = vunpack.c.l.b16 %v697
  %v730 = vunpack.c.l.b16 %v698
  %v731 = vunpack.c.l.b16 %v699
  %v732 = vunpack.c.l.b16 %v700
  %v733 = vunpack.c.l.b16 %v701
  %v734 = vunpack.c.l.b16 %v702
  %v735 = vunpack.c.l.b16 %v703
  %v736 = vunpack.c.l.b16 %v704
  %v737 = vunpack.c.l.b16 %v705
  %v738 = vunpack.c.l.b16 %v706
  %v739 = vunpack.c.l.b16 %v707
  %v740 = vunpack.c.l.b16 %v708
  %v741 = vpack.c.b16 %v726, %v725
  %v742 = vpack.c.b16 %v728, %v727
  %v743 = vpack.c.b16 %v730, %v729
  %v744 = vpack.c.b16 %v732, %v731
  %v745 = vpack.c.b16 %v734, %v733
  %v746 = vpack.c.b16 %v736, %v735
  %v747 = vpack.c.b16 %v738, %v737
  %v748 = vpack.c.b16 %v740, %v739
  %757 = vmatpush.bf16.msra.mxu0 %v748
  %758 = vmatpush.bf16.msra.mxu0 %v747
  %759 = vmatpush.bf16.msra.mxu0 %v746
  %760 = vmatpush.bf16.msra.mxu0 %v745
  %761 = vmatpush.bf16.msra.mxu0 %v744
  %762 = vmatpush.bf16.msra.mxu0 %v743
  %763 = vmatpush.bf16.msra.mxu0 %v742
  %764 = vmatpush.bf16.msra.mxu0 %v741
  %765 = vmatmul.bf16.gmra.mxu0 %v692
  %v766 = vpop.f32.mrf.mxu0
  %v767 = vadd.f32 0.0, %v766
  %v768 = vpop.f32.mrf.mxu0
  %769 = vdwg.mxu0
  %v770 = vadd.f32 %v691, %v767
  %v771 = vmul.f32 %v770, 0.5
  %v772 = vtanh.pop %v771
  %v773 = vadd.f32 %v772, 1.0
  %v774 = vmul.f32 %v773, 0.5
  %v775 = vtanh.pop %v770
  %v776 = vmul.f32 %v774, %v675
  %778 = vrot.lane.b32.xlu0 %v775, 64
  %v779 = vpop.permute.xlu0 %778
  %v781 = vmul.f32 %v774, %v779
  %783 = vrot.lane.b32.xlu0 %v781, 32
  %v784 = vpop.permute.xlu0 %783
  %v786 = vadd.f32 %v776, %v784
  %v787 = vtanh.pop %v786
  %789 = vrot.lane.b32.xlu0 %v787, 64
  %v790 = vpop.permute.xlu0 %789
  %v792 = vmul.f32 %v774, %v790
  %794 = vrot.lane.b32.xlu0 %v792, 32
  %v795 = vpop.permute.xlu0 %794
  %v797 = vsel %vm131, %v795, 0.0
  %s798 = scalar_lea.vmem %s2, 48
  %799 = vst [vmem:[%s798] sm:$0xff] %v797
  %s800 = scalar_lea.vmem %s0, 28
  %v801 = vld [vmem:[%s800] sm:$0xf]
  %v802 = vunpack.c.l.bf16 %v801
  %v803 = vpack.c.bf16 %v797, %v797
  %v804 = vld [vmem:[%s1] sm:$0xf]
  %v805 = vld [vmem:[%s1 + $0x4] sm:$0xf]
  %v806 = vld [vmem:[%s1 + $0x8] sm:$0xf]
  %v807 = vld [vmem:[%s1 + $0xc] sm:$0xf]
  %v808 = vld [vmem:[%s1 + $0x10] sm:$0xf]
  %v809 = vld [vmem:[%s1 + $0x14] sm:$0xf]
  %v810 = vld [vmem:[%s1 + $0x18] sm:$0xf]
  %v811 = vld [vmem:[%s1 + $0x1c] sm:$0xf]
  %v812 = vld [vmem:[%s1 + $0x20] sm:$0xf]
  %v813 = vld [vmem:[%s1 + $0x24] sm:$0xf]
  %v814 = vld [vmem:[%s1 + $0x28] sm:$0xf]
  %v815 = vld [vmem:[%s1 + $0x2c] sm:$0xf]
  %v816 = vld [vmem:[%s1 + $0x30] sm:$0xf]
  %v817 = vld [vmem:[%s1 + $0x34] sm:$0xf]
  %v818 = vld [vmem:[%s1 + $0x38] sm:$0xf]
  %v819 = vld [vmem:[%s1 + $0x3c] sm:$0xf]
  %v836 = vunpack.c.l.b16 %v804
  %v837 = vunpack.c.l.b16 %v805
  %v838 = vunpack.c.l.b16 %v806
  %v839 = vunpack.c.l.b16 %v807
  %v840 = vunpack.c.l.b16 %v808
  %v841 = vunpack.c.l.b16 %v809
  %v842 = vunpack.c.l.b16 %v810
  %v843 = vunpack.c.l.b16 %v811
  %v844 = vunpack.c.l.b16 %v812
  %v845 = vunpack.c.l.b16 %v813
  %v846 = vunpack.c.l.b16 %v814
  %v847 = vunpack.c.l.b16 %v815
  %v848 = vunpack.c.l.b16 %v816
  %v849 = vunpack.c.l.b16 %v817
  %v850 = vunpack.c.l.b16 %v818
  %v851 = vunpack.c.l.b16 %v819
  %v852 = vpack.c.b16 %v837, %v836
  %v853 = vpack.c.b16 %v839, %v838
  %v854 = vpack.c.b16 %v841, %v840
  %v855 = vpack.c.b16 %v843, %v842
  %v856 = vpack.c.b16 %v845, %v844
  %v857 = vpack.c.b16 %v847, %v846
  %v858 = vpack.c.b16 %v849, %v848
  %v859 = vpack.c.b16 %v851, %v850
  %868 = vmatpush.bf16.msra.mxu0 %v859
  %869 = vmatpush.bf16.msra.mxu0 %v858
  %870 = vmatpush.bf16.msra.mxu0 %v857
  %871 = vmatpush.bf16.msra.mxu0 %v856
  %872 = vmatpush.bf16.msra.mxu0 %v855
  %873 = vmatpush.bf16.msra.mxu0 %v854
  %874 = vmatpush.bf16.msra.mxu0 %v853
  %875 = vmatpush.bf16.msra.mxu0 %v852
  %876 = vmatmul.bf16.gmra.mxu0 %v803
  %v877 = vpop.f32.mrf.mxu0
  %v878 = vadd.f32 0.0, %v877
  %v879 = vpop.f32.mrf.mxu0
  %880 = vdwg.mxu0
  %v881 = vadd.f32 %v802, %v878
  %v882 = vmul.f32 %v881, 0.5
  %v883 = vtanh.pop %v882
  %v884 = vadd.f32 %v883, 1.0
  %v885 = vmul.f32 %v884, 0.5
  %v886 = vtanh.pop %v881
  %v887 = vmul.f32 %v885, %v786
  %889 = vrot.lane.b32.xlu0 %v886, 64
  %v890 = vpop.permute.xlu0 %889
  %v892 = vmul.f32 %v885, %v890
  %894 = vrot.lane.b32.xlu0 %v892, 32
  %v895 = vpop.permute.xlu0 %894
  %v897 = vadd.f32 %v887, %v895
  %v898 = vtanh.pop %v897
  %900 = vrot.lane.b32.xlu0 %v898, 64
  %v901 = vpop.permute.xlu0 %900
  %v903 = vmul.f32 %v885, %v901
  %905 = vrot.lane.b32.xlu0 %v903, 32
  %v906 = vpop.permute.xlu0 %905
  %v908 = vsel %vm131, %v906, 0.0
  %s909 = scalar_lea.vmem %s2, 56
  %910 = vst [vmem:[%s909] sm:$0xff] %v908
  %911 = vst [vmem:[#allocation2] sm:$0xff] %v908
  %913 = vrot.lane.b32.xlu0 %v897, 96
  %v914 = vpop.permute.xlu0 %913
  %916 = vst.msk [vmem:[#allocation3] sm:$0xff] %vm131, %v914
  // Predicated region
  $region14: #{rnn_model_forward.2} parent=0 // pred_check
    _
  $region15: #{rnn_model_forward.2} parent=0 // pred_check_branch
    %918 = sbr.rel (0) target = $region17
  $region16: #{rnn_model_forward.2} parent=0 // pred_region
    _
  $region17: #{rnn_model_forward.2} parent=0 // pred_fallthru
    _
  // Predicated region
  $region18: #{rnn_model_forward.2} parent=0 // pred_check
    _
  $region19: #{rnn_model_forward.2} parent=0 // pred_check_branch
    %920 = sbr.rel (0) target = $region21
  $region20: #{rnn_model_forward.2} parent=0 // pred_region
    _
  $region21: #{rnn_model_forward.2} parent=0 // pred_fallthru
    _

</llo_original>
